<compile_context>
chip_gen: v7x
topology: tpu7x:2x2x1
jax: 0.10.0
libtpu: 0.0.40
codegen_flags: <defaults>
</compile_context>

<pallas_src>
import functools
import math

import jax
import jax.numpy as jnp
from jax import lax
from jax.experimental import pallas as pl
from jax.experimental.pallas import tpu as pltpu


def latend_kernel(x_ref, w1_ref, b1_ref, w2_ref, b2_ref, w3_ref, b3_ref,
                  w4_ref, b4_ref, masks_ref, o_ref, hpad_ref, *, img_w, img_hw):
    # x_ref   : (N, C0, HW)          all images; channels on sublanes, HW on lanes
    # w1..w3  : (Ck, Ck-1)           1x1 conv weights as matrices
    # w4_ref  : (3, C4, 3*C3)        3x3 conv weights grouped by kernel row dy,
    #                                K index inside a group = dx*C3 + cin
    # b*_ref  : (Ck, 1)              biases (broadcast along lanes)
    # masks_ref: (4, N*HW) f32       0/1 edge masks: [c>=1, c<=W-2, r>=1, r<=H-2]
    # o_ref   : (N, C4, HW)          output
    # hpad_ref: (C3, N*HW + 2*(W+1)) flat padded copy of conv3 output
    W = img_w
    HW = img_hw
    N = x_ref.shape[0]
    NHW = N * HW
    pad = W + 1

    # Fold the batch onto lanes: (N, C0, HW) -> (C0, N*HW).  Each piece is a
    # multiple of 128 lanes, so this is tile-aligned vreg placement.
    x = jnp.concatenate([x_ref[n] for n in range(N)], axis=-1)

    def conv1x1_relu(w_ref, b_ref, act):
        y = jnp.dot(w_ref[...], act, preferred_element_type=jnp.float32)
        return jnp.maximum(y + b_ref[...], 0.0)            # bias + ReLU, lane-dense

    h = conv1x1_relu(w1_ref, b1_ref, x)                    # (C1, NHW)
    h = conv1x1_relu(w2_ref, b2_ref, h)                    # (C2, NHW)
    h = conv1x1_relu(w3_ref, b3_ref, h)                    # (C3, NHW)
    c3 = h.shape[0]
    c4 = o_ref.shape[1]

    # Flat zero-padded copy: hpad[:, pad + q] == h[:, q].  The two pad strips
    # only keep the +-(W+1) tap slices in bounds; every cross-row / cross-image
    # read is zeroed by the hoisted masks below.
    hpad_ref[:, :pad] = jnp.zeros((c3, pad), jnp.float32)
    hpad_ref[:, pad + NHW:pad + NHW + pad] = jnp.zeros((c3, pad), jnp.float32)
    hpad_ref[:, pad:pad + NHW] = h

    # Hoisted 0/1 edge masks (computed once in the wrapper, loaded once here).
    masks = masks_ref[...]                                 # (4, NHW)
    col_masks = (masks[0:1, :], None, masks[1:2, :])       # ox = -1, 0, +1
    row_masks = (masks[2:3, :], None, masks[3:4, :])       # oy = -1, 0, +1

    acc = jnp.zeros((c4, NHW), jnp.float32)
    for dy in range(3):
        taps = []
        for dx in range(3):
            off = (dy - 1) * W + (dx - 1)                  # in [-(W+1), W+1]
            start = pad + off                              # static, in [0, 2W+2]
            tap = hpad_ref[:, start:start + NHW]           # (C3, NHW) lane-dense
            cm = col_masks[dx]
            if cm is not None:
                tap = tap * cm                             # kill column wraps
            taps.append(tap)
        g = jnp.concatenate(taps, axis=0)                  # (3*C3, NHW)
        rm = row_masks[dy]
        if rm is not None:
            g = g * rm                                     # kill row / image bleed
        # One MXU dot per kernel row: K = 3*C3, lane-dense N = NHW.
        acc = acc + jnp.dot(w4_ref[dy], g, preferred_element_type=jnp.float32)

    out = jnp.maximum(acc + b4_ref[...], 0.0)              # (C4, NHW)
    for n in range(N):
        o_ref[n] = out[:, n * HW:(n + 1) * HW].astype(o_ref.dtype)


def latend_pallas(x, w1, b1, w2, b2, w3, b3, w4, b4):
    """x: (N, C0, H, W) f32 NCHW; w_i: PyTorch OIHW (Cout, Cin, k, k); b_i: (Cout,)."""
    N, C0, H, W = x.shape
    C1 = w1.shape[0]           # out_plane // 2
    C2 = w2.shape[0]           # out_plane // 4
    C3 = w3.shape[0]           # out_plane // 8 (== w4 Cin)
    C4 = w4.shape[0]           # out_plane // 8
    HW = H * W
    NHW = N * HW
    pad = W + 1

    # NCHW -> (N, C, H*W): pure reshape (spatial already minor/contiguous).
    x2 = x.reshape(N, C0, HW)

    # 1x1 conv weights as (Cout, Cin); biases as (Cout, 1) columns.
    w1m = w1.reshape(C1, C0)
    w2m = w2.reshape(C2, C1)
    w3m = w3.reshape(C3, C2)
    # 3x3 conv weight -> (3, Cout, 3*Cin) grouped by kernel row dy; inside a
    # group the K index is dx*Cin + cin, matching the kernel's tap stacking.
    w4g = jnp.transpose(w4, (2, 0, 3, 1)).reshape(3, C4, 3 * C3)
    b1c = b1.reshape(C1, 1)
    b2c = b2.reshape(C2, 1)
    b3c = b3.reshape(C3, 1)
    b4c = b4.reshape(C4, 1)

    # Hoisted 0/1 edge masks over the folded lane axis (flat pos -> in-image
    # row/col).  Rows: [c>=1, c<=W-2, r>=1, r<=H-2].
    q = jnp.arange(NHW, dtype=jnp.int32)
    c = (q % HW) % W
    r = (q % HW) // W
    masks = jnp.stack([c >= 1, c <= W - 2, r >= 1, r <= H - 2],
                      axis=0).astype(jnp.float32)          # (4, NHW)

    flops = 2 * NHW * (C1 * C0 + C2 * C1 + C3 * C2 + C4 * 9 * C3)
    bytes_accessed = 4 * (x2.size + N * C4 * HW + w1m.size + w2m.size
                          + w3m.size + w4g.size + C1 + C2 + C3 + C4 + masks.size)
    cost = pl.CostEstimate(flops=flops, transcendentals=0,
                           bytes_accessed=bytes_accessed)

    kernel = functools.partial(latend_kernel, img_w=W, img_hw=HW)

    out = pl.pallas_call(
        kernel,
        out_shape=jax.ShapeDtypeStruct((N, C4, HW), x.dtype),
        grid_spec=pltpu.PrefetchScalarGridSpec(
            num_scalar_prefetch=0,
            grid=(1,),                 # single invocation: working set << VMEM,
            in_specs=[                 # overhead-bound regime -> fewest steps wins
                pl.BlockSpec((N, C0, HW), lambda i: (0, 0, 0)),
                pl.BlockSpec((C1, C0), lambda i: (0, 0)),
                pl.BlockSpec((C1, 1), lambda i: (0, 0)),
                pl.BlockSpec((C2, C1), lambda i: (0, 0)),
                pl.BlockSpec((C2, 1), lambda i: (0, 0)),
                pl.BlockSpec((C3, C2), lambda i: (0, 0)),
                pl.BlockSpec((C3, 1), lambda i: (0, 0)),
                pl.BlockSpec((3, C4, 3 * C3), lambda i: (0, 0, 0)),
                pl.BlockSpec((C4, 1), lambda i: (0, 0)),
                pl.BlockSpec((4, NHW), lambda i: (0, 0)),
            ],
            out_specs=pl.BlockSpec((N, C4, HW), lambda i: (0, 0, 0)),
            scratch_shapes=[
                pltpu.VMEM((C3, NHW + 2 * pad), jnp.float32),
            ],
        ),
        compiler_params=pltpu.CompilerParams(
            dimension_semantics=("arbitrary",)),
        cost_estimate=cost,
    )(x2, w1m, b1c, w2m, b2c, w3m, b3c, w4g, b4c, masks)

    return out.reshape(N, C4, H, W)


def latend_reference(x, w1, b1, w2, b2, w3, b3, w4, b4):
    """Pure-JAX reference with the same semantics as LatenD.forward."""
    dn = ("NCHW", "OIHW", "NCHW")

    def conv_relu(h, w, b):
        y = lax.conv_general_dilated(h, w, window_strides=(1, 1),
                                     padding="SAME", dimension_numbers=dn)
        return jnp.maximum(y + b[None, :, None, None], 0.0)

    h = conv_relu(x, w1, b1)
    h = conv_relu(h, w2, b2)
    h = conv_relu(h, w3, b3)
    return conv_relu(h, w4, b4)


if __name__ == "__main__":
    out_plane = 64                       # LatenD(out_plane): channels 64->32->16->8->8
    N, H, W = 2, 16, 16
    key = jax.random.PRNGKey(0)
    keys = jax.random.split(key, 9)
    x = jax.random.normal(keys[0], (N, out_plane, H, W), jnp.float32)

    def conv_params(kw, kb, cout, cin, k):
        # Deterministic kaiming-uniform-style init (fan_in = cin*k*k), OIHW layout.
        bound = 1.0 / math.sqrt(cin * k * k)
        w = jax.random.uniform(kw, (cout, cin, k, k), jnp.float32, -bound, bound)
        b = jax.random.uniform(kb, (cout,), jnp.float32, -bound, bound)
        return w, b

    w1, b1 = conv_params(keys[1], keys[2], out_plane // 2, out_plane, 1)
    w2, b2 = conv_params(keys[3], keys[4], out_plane // 4, out_plane // 2, 1)
    w3, b3 = conv_params(keys[5], keys[6], out_plane // 8, out_plane // 4, 1)
    w4, b4 = conv_params(keys[7], keys[8], out_plane // 8, out_plane // 8, 3)

    y = latend_pallas(x, w1, b1, w2, b2, w3, b3, w4, b4)
    jax.block_until_ready(y)

    y_ref = latend_reference(x, w1, b1, w2, b2, w3, b3, w4, b4)
    assert y.shape == (N, out_plane // 8, H, W)
    assert jnp.allclose(y, y_ref, atol=5e-4, rtol=5e-4), "mismatch vs JAX reference"

    print("KERNEL_OK")
</pallas_src>

<mosaic_0001>
module attributes {stable_mosaic.version = 11 : i64} {
  func.func @latend_kernel(%arg0: i32, %arg1: memref<2x64x256xf32, #tpu.memory_space<vmem>>, %arg2: memref<32x64xf32, #tpu.memory_space<vmem>>, %arg3: memref<32x1xf32, #tpu.memory_space<vmem>>, %arg4: memref<16x32xf32, #tpu.memory_space<vmem>>, %arg5: memref<16x1xf32, #tpu.memory_space<vmem>>, %arg6: memref<8x16xf32, #tpu.memory_space<vmem>>, %arg7: memref<8x1xf32, #tpu.memory_space<vmem>>, %arg8: memref<3x8x24xf32, #tpu.memory_space<vmem>>, %arg9: memref<8x1xf32, #tpu.memory_space<vmem>>, %arg10: memref<4x512xf32, #tpu.memory_space<vmem>>, %arg11: memref<2x8x256xf32, #tpu.memory_space<vmem>>, %arg12: memref<8x546xf32, #tpu.memory_space<vmem>>) attributes {dimension_semantics = [#tpu.dimension_semantics<arbitrary>], iteration_bounds = array<i64: 1>, scalar_prefetch = 0 : i64, scratch_operands = 1 : i64, tpu.core_type = #tpu.core_type<tc>, window_params = [{pipeline_mode = #tpu.pipeline_mode<synchronous>, transform_indices = @transform_0, window_bounds = array<i64: 2, 64, 256>}, {pipeline_mode = #tpu.pipeline_mode<synchronous>, transform_indices = @transform_1, window_bounds = array<i64: 32, 64>}, {pipeline_mode = #tpu.pipeline_mode<synchronous>, transform_indices = @transform_2, window_bounds = array<i64: 32, 1>}, {pipeline_mode = #tpu.pipeline_mode<synchronous>, transform_indices = @transform_3, window_bounds = array<i64: 16, 32>}, {pipeline_mode = #tpu.pipeline_mode<synchronous>, transform_indices = @transform_4, window_bounds = array<i64: 16, 1>}, {pipeline_mode = #tpu.pipeline_mode<synchronous>, transform_indices = @transform_5, window_bounds = array<i64: 8, 16>}, {pipeline_mode = #tpu.pipeline_mode<synchronous>, transform_indices = @transform_6, window_bounds = array<i64: 8, 1>}, {pipeline_mode = #tpu.pipeline_mode<synchronous>, transform_indices = @transform_7, window_bounds = array<i64: 3, 8, 24>}, {pipeline_mode = #tpu.pipeline_mode<synchronous>, transform_indices = @transform_8, window_bounds = array<i64: 8, 1>}, {pipeline_mode = #tpu.pipeline_mode<synchronous>, transform_indices = @transform_9, window_bounds = array<i64: 4, 512>}, {pipeline_mode = #tpu.pipeline_mode<synchronous>, transform_indices = @transform_10, window_bounds = array<i64: 2, 8, 256>}]} {
    %c0 = arith.constant 0 : index
    %c0_0 = arith.constant 0 : index
    %c0_1 = arith.constant 0 : index
    %0 = vector.load %arg1[%c0, %c0_0, %c0_1] : memref<2x64x256xf32, #tpu.memory_space<vmem>>, vector<1x64x256xf32>
    %1 = vector.shape_cast %0 : vector<1x64x256xf32> to vector<64x256xf32>
    %c1 = arith.constant 1 : index
    %c0_2 = arith.constant 0 : index
    %c0_3 = arith.constant 0 : index
    %2 = vector.load %arg1[%c1, %c0_2, %c0_3] : memref<2x64x256xf32, #tpu.memory_space<vmem>>, vector<1x64x256xf32>
    %3 = vector.shape_cast %2 : vector<1x64x256xf32> to vector<64x256xf32>
    %4 = tpu.concatenate %1, %3 in 1 : vector<64x256xf32>, vector<64x256xf32> -> vector<64x512xf32>
    %c0_4 = arith.constant 0 : index
    %c0_5 = arith.constant 0 : index
    %5 = vector.load %arg2[%c0_4, %c0_5] : memref<32x64xf32, #tpu.memory_space<vmem>>, vector<32x64xf32>
    %cst = arith.constant dense<0.000000e+00> : vector<32x512xf32>
    %6 = tpu.matmul %5, %4, %cst {dimension_numbers = #tpu.dot_dimension_numbers<[1], [0], [0], [1], [0, 0, 1, 1], [], []>} : vector<32x64xf32>, vector<64x512xf32>, vector<32x512xf32> -> vector<32x512xf32>
    %c0_6 = arith.constant 0 : index
    %c0_7 = arith.constant 0 : index
    %7 = vector.load %arg3[%c0_6, %c0_7] : memref<32x1xf32, #tpu.memory_space<vmem>>, vector<32x1xf32>
    %8 = vector.broadcast %7 : vector<32x1xf32> to vector<32x512xf32>
    %9 = arith.addf %6, %8 : vector<32x512xf32>
    %cst_8 = arith.constant 0.000000e+00 : f32
    %10 = vector.broadcast %cst_8 : f32 to vector<32x512xf32>
    %11 = arith.maximumf %9, %10 : vector<32x512xf32>
    %c0_9 = arith.constant 0 : index
    %c0_10 = arith.constant 0 : index
    %12 = vector.load %arg4[%c0_9, %c0_10] : memref<16x32xf32, #tpu.memory_space<vmem>>, vector<16x32xf32>
    %cst_11 = arith.constant dense<0.000000e+00> : vector<16x512xf32>
    %13 = tpu.matmul %12, %11, %cst_11 {dimension_numbers = #tpu.dot_dimension_numbers<[1], [0], [0], [1], [0, 0, 1, 1], [], []>} : vector<16x32xf32>, vector<32x512xf32>, vector<16x512xf32> -> vector<16x512xf32>
    %c0_12 = arith.constant 0 : index
    %c0_13 = arith.constant 0 : index
    %14 = vector.load %arg5[%c0_12, %c0_13] : memref<16x1xf32, #tpu.memory_space<vmem>>, vector<16x1xf32>
    %15 = vector.broadcast %14 : vector<16x1xf32> to vector<16x512xf32>
    %16 = arith.addf %13, %15 : vector<16x512xf32>
    %cst_14 = arith.constant 0.000000e+00 : f32
    %17 = vector.broadcast %cst_14 : f32 to vector<16x512xf32>
    %18 = arith.maximumf %16, %17 : vector<16x512xf32>
    %c0_15 = arith.constant 0 : index
    %c0_16 = arith.constant 0 : index
    %19 = vector.load %arg6[%c0_15, %c0_16] : memref<8x16xf32, #tpu.memory_space<vmem>>, vector<8x16xf32>
    %cst_17 = arith.constant dense<0.000000e+00> : vector<8x512xf32>
    %20 = tpu.matmul %19, %18, %cst_17 {dimension_numbers = #tpu.dot_dimension_numbers<[1], [0], [0], [1], [0, 0, 1, 1], [], []>} : vector<8x16xf32>, vector<16x512xf32>, vector<8x512xf32> -> vector<8x512xf32>
    %c0_18 = arith.constant 0 : index
    %c0_19 = arith.constant 0 : index
    %21 = vector.load %arg7[%c0_18, %c0_19] : memref<8x1xf32, #tpu.memory_space<vmem>>, vector<8x1xf32>
    %22 = vector.broadcast %21 : vector<8x1xf32> to vector<8x512xf32>
    %23 = arith.addf %20, %22 : vector<8x512xf32>
    %cst_20 = arith.constant 0.000000e+00 : f32
    %24 = vector.broadcast %cst_20 : f32 to vector<8x512xf32>
    %25 = arith.maximumf %23, %24 : vector<8x512xf32>
    %cst_21 = arith.constant 0.000000e+00 : f32
    %26 = vector.broadcast %cst_21 : f32 to vector<8x17xf32>
    %c0_22 = arith.constant 0 : index
    %c0_23 = arith.constant 0 : index
    %27 = vector.load %arg12[%c0_22, %c0_23] : memref<8x546xf32, #tpu.memory_space<vmem>>, vector<8x17xf32>
    tpu.vector_store %arg12[%c0_22, %c0_23], %26 {strides = array<i32>} : memref<8x546xf32, #tpu.memory_space<vmem>>, vector<8x17xf32>,
    %cst_24 = arith.constant 0.000000e+00 : f32
    %28 = vector.broadcast %cst_24 : f32 to vector<8x17xf32>
    %c0_25 = arith.constant 0 : index
    %c529 = arith.constant 529 : index
    %29 = vector.load %arg12[%c0_25, %c529] : memref<8x546xf32, #tpu.memory_space<vmem>>, vector<8x17xf32>
    tpu.vector_store %arg12[%c0_25, %c529], %28 {strides = array<i32>} : memref<8x546xf32, #tpu.memory_space<vmem>>, vector<8x17xf32>,
    %c0_26 = arith.constant 0 : index
    %c17 = arith.constant 17 : index
    %30 = vector.load %arg12[%c0_26, %c17] : memref<8x546xf32, #tpu.memory_space<vmem>>, vector<8x512xf32>
    tpu.vector_store %arg12[%c0_26, %c17], %25 {strides = array<i32>} : memref<8x546xf32, #tpu.memory_space<vmem>>, vector<8x512xf32>,
    %c0_27 = arith.constant 0 : index
    %c0_28 = arith.constant 0 : index
    %31 = vector.load %arg10[%c0_27, %c0_28] : memref<4x512xf32, #tpu.memory_space<vmem>>, vector<4x512xf32>
    %32 = vector.extract_strided_slice %31 {offsets = [0, 0], sizes = [1, 512], strides = [1, 1]} : vector<4x512xf32> to vector<1x512xf32>
    %33 = vector.extract_strided_slice %31 {offsets = [1, 0], sizes = [1, 512], strides = [1, 1]} : vector<4x512xf32> to vector<1x512xf32>
    %34 = vector.extract_strided_slice %31 {offsets = [2, 0], sizes = [1, 512], strides = [1, 1]} : vector<4x512xf32> to vector<1x512xf32>
    %35 = vector.extract_strided_slice %31 {offsets = [3, 0], sizes = [1, 512], strides = [1, 1]} : vector<4x512xf32> to vector<1x512xf32>
    %cst_29 = arith.constant 0.000000e+00 : f32
    %36 = vector.broadcast %cst_29 : f32 to vector<8x512xf32>
    %c0_30 = arith.constant 0 : index
    %c0_31 = arith.constant 0 : index
    %37 = vector.load %arg12[%c0_30, %c0_31] : memref<8x546xf32, #tpu.memory_space<vmem>>, vector<8x512xf32>
    %38 = vector.broadcast %32 : vector<1x512xf32> to vector<8x512xf32>
    %39 = arith.mulf %37, %38 : vector<8x512xf32>
    %c0_32 = arith.constant 0 : index
    %c1_33 = arith.constant 1 : index
    %40 = vector.load %arg12[%c0_32, %c1_33] : memref<8x546xf32, #tpu.memory_space<vmem>>, vector<8x512xf32>
    %c0_34 = arith.constant 0 : index
    %c2 = arith.constant 2 : index
    %41 = vector.load %arg12[%c0_34, %c2] : memref<8x546xf32, #tpu.memory_space<vmem>>, vector<8x512xf32>
    %42 = vector.broadcast %33 : vector<1x512xf32> to vector<8x512xf32>
    %43 = arith.mulf %41, %42 : vector<8x512xf32>
    %44 = tpu.concatenate %39, %40, %43 in 0 : vector<8x512xf32>, vector<8x512xf32>, vector<8x512xf32> -> vector<24x512xf32>
    %45 = vector.broadcast %34 : vector<1x512xf32> to vector<24x512xf32>
    %46 = arith.mulf %44, %45 : vector<24x512xf32>
    %c0_35 = arith.constant 0 : index
    %c0_36 = arith.constant 0 : index
    %c0_37 = arith.constant 0 : index
    %47 = vector.load %arg8[%c0_35, %c0_36, %c0_37] : memref<3x8x24xf32, #tpu.memory_space<vmem>>, vector<1x8x24xf32>
    %48 = vector.shape_cast %47 : vector<1x8x24xf32> to vector<8x24xf32>
    %cst_38 = arith.constant dense<0.000000e+00> : vector<8x512xf32>
    %49 = tpu.matmul %48, %46, %cst_38 {dimension_numbers = #tpu.dot_dimension_numbers<[1], [0], [0], [1], [0, 0, 1, 1], [], []>} : vector<8x24xf32>, vector<24x512xf32>, vector<8x512xf32> -> vector<8x512xf32>
    %50 = arith.addf %36, %49 : vector<8x512xf32>
    %c0_39 = arith.constant 0 : index
    %c16 = arith.constant 16 : index
    %51 = vector.load %arg12[%c0_39, %c16] : memref<8x546xf32, #tpu.memory_space<vmem>>, vector<8x512xf32>
    %52 = vector.broadcast %32 : vector<1x512xf32> to vector<8x512xf32>
    %53 = arith.mulf %51, %52 : vector<8x512xf32>
    %c0_40 = arith.constant 0 : index
    %c17_41 = arith.constant 17 : index
    %54 = vector.load %arg12[%c0_40, %c17_41] : memref<8x546xf32, #tpu.memory_space<vmem>>, vector<8x512xf32>
    %c0_42 = arith.constant 0 : index
    %c18 = arith.constant 18 : index
    %55 = vector.load %arg12[%c0_42, %c18] : memref<8x546xf32, #tpu.memory_space<vmem>>, vector<8x512xf32>
    %56 = vector.broadcast %33 : vector<1x512xf32> to vector<8x512xf32>
    %57 = arith.mulf %55, %56 : vector<8x512xf32>
    %58 = tpu.concatenate %53, %54, %57 in 0 : vector<8x512xf32>, vector<8x512xf32>, vector<8x512xf32> -> vector<24x512xf32>
    %c1_43 = arith.constant 1 : index
    %c0_44 = arith.constant 0 : index
    %c0_45 = arith.constant 0 : index
    %59 = vector.load %arg8[%c1_43, %c0_44, %c0_45] : memref<3x8x24xf32, #tpu.memory_space<vmem>>, vector<1x8x24xf32>
    %60 = vector.shape_cast %59 : vector<1x8x24xf32> to vector<8x24xf32>
    %cst_46 = arith.constant dense<0.000000e+00> : vector<8x512xf32>
    %61 = tpu.matmul %60, %58, %cst_46 {dimension_numbers = #tpu.dot_dimension_numbers<[1], [0], [0], [1], [0, 0, 1, 1], [], []>} : vector<8x24xf32>, vector<24x512xf32>, vector<8x512xf32> -> vector<8x512xf32>
    %62 = arith.addf %50, %61 : vector<8x512xf32>
    %c0_47 = arith.constant 0 : index
    %c32 = arith.constant 32 : index
    %63 = vector.load %arg12[%c0_47, %c32] : memref<8x546xf32, #tpu.memory_space<vmem>>, vector<8x512xf32>
    %64 = vector.broadcast %32 : vector<1x512xf32> to vector<8x512xf32>
    %65 = arith.mulf %63, %64 : vector<8x512xf32>
    %c0_48 = arith.constant 0 : index
    %c33 = arith.constant 33 : index
    %66 = vector.load %arg12[%c0_48, %c33] : memref<8x546xf32, #tpu.memory_space<vmem>>, vector<8x512xf32>
    %c0_49 = arith.constant 0 : index
    %c34 = arith.constant 34 : index
    %67 = vector.load %arg12[%c0_49, %c34] : memref<8x546xf32, #tpu.memory_space<vmem>>, vector<8x512xf32>
    %68 = vector.broadcast %33 : vector<1x512xf32> to vector<8x512xf32>
    %69 = arith.mulf %67, %68 : vector<8x512xf32>
    %70 = tpu.concatenate %65, %66, %69 in 0 : vector<8x512xf32>, vector<8x512xf32>, vector<8x512xf32> -> vector<24x512xf32>
    %71 = vector.broadcast %35 : vector<1x512xf32> to vector<24x512xf32>
    %72 = arith.mulf %70, %71 : vector<24x512xf32>
    %c2_50 = arith.constant 2 : index
    %c0_51 = arith.constant 0 : index
    %c0_52 = arith.constant 0 : index
    %73 = vector.load %arg8[%c2_50, %c0_51, %c0_52] : memref<3x8x24xf32, #tpu.memory_space<vmem>>, vector<1x8x24xf32>
    %74 = vector.shape_cast %73 : vector<1x8x24xf32> to vector<8x24xf32>
    %cst_53 = arith.constant dense<0.000000e+00> : vector<8x512xf32>
    %75 = tpu.matmul %74, %72, %cst_53 {dimension_numbers = #tpu.dot_dimension_numbers<[1], [0], [0], [1], [0, 0, 1, 1], [], []>} : vector<8x24xf32>, vector<24x512xf32>, vector<8x512xf32> -> vector<8x512xf32>
    %76 = arith.addf %62, %75 : vector<8x512xf32>
    %c0_54 = arith.constant 0 : index
    %c0_55 = arith.constant 0 : index
    %77 = vector.load %arg9[%c0_54, %c0_55] : memref<8x1xf32, #tpu.memory_space<vmem>>, vector<8x1xf32>
    %78 = vector.broadcast %77 : vector<8x1xf32> to vector<8x512xf32>
    %79 = arith.addf %76, %78 : vector<8x512xf32>
    %cst_56 = arith.constant 0.000000e+00 : f32
    %80 = vector.broadcast %cst_56 : f32 to vector<8x512xf32>
    %81 = arith.maximumf %79, %80 : vector<8x512xf32>
    %82 = vector.extract_strided_slice %81 {offsets = [0, 0], sizes = [8, 256], strides = [1, 1]} : vector<8x512xf32> to vector<8x256xf32>
    %c0_57 = arith.constant 0 : index
    %c0_58 = arith.constant 0 : index
    %c0_59 = arith.constant 0 : index
    %83 = vector.load %arg11[%c0_57, %c0_58, %c0_59] : memref<2x8x256xf32, #tpu.memory_space<vmem>>, vector<1x8x256xf32>
    %84 = vector.shape_cast %83 : vector<1x8x256xf32> to vector<8x256xf32>
    %85 = vector.shape_cast %82 : vector<8x256xf32> to vector<1x8x256xf32>
    tpu.vector_store %arg11[%c0_57, %c0_58, %c0_59], %85 {strides = array<i32>} : memref<2x8x256xf32, #tpu.memory_space<vmem>>, vector<1x8x256xf32>,
    %86 = vector.extract_strided_slice %81 {offsets = [0, 256], sizes = [8, 256], strides = [1, 1]} : vector<8x512xf32> to vector<8x256xf32>
    %c1_60 = arith.constant 1 : index
    %c0_61 = arith.constant 0 : index
    %c0_62 = arith.constant 0 : index
    %87 = vector.load %arg11[%c1_60, %c0_61, %c0_62] : memref<2x8x256xf32, #tpu.memory_space<vmem>>, vector<1x8x256xf32>
    %88 = vector.shape_cast %87 : vector<1x8x256xf32> to vector<8x256xf32>
    %89 = vector.shape_cast %86 : vector<8x256xf32> to vector<1x8x256xf32>
    tpu.vector_store %arg11[%c1_60, %c0_61, %c0_62], %89 {strides = array<i32>} : memref<2x8x256xf32, #tpu.memory_space<vmem>>, vector<1x8x256xf32>,
    return
  }
  func.func @transform_0(%arg0: i32) -> (i32, i32, i32) {
    %c0_i32 = arith.constant 0 : i32
    %c0_i32_0 = arith.constant 0 : i32
    %c0_i32_1 = arith.constant 0 : i32
    %c0_i32_2 = arith.constant 0 : i32
    return %c0_i32, %c0_i32_0, %c0_i32_1 : i32, i32, i32
  }
  func.func @transform_1(%arg0: i32) -> (i32, i32) {
    %c0_i32 = arith.constant 0 : i32
    %c0_i32_0 = arith.constant 0 : i32
    %c0_i32_1 = arith.constant 0 : i32
    return %c0_i32, %c0_i32_0 : i32, i32
  }
  func.func @transform_2(%arg0: i32) -> (i32, i32) {
    %c0_i32 = arith.constant 0 : i32
    %c0_i32_0 = arith.constant 0 : i32
    %c0_i32_1 = arith.constant 0 : i32
    return %c0_i32, %c0_i32_0 : i32, i32
  }
  func.func @transform_3(%arg0: i32) -> (i32, i32) {
    %c0_i32 = arith.constant 0 : i32
    %c0_i32_0 = arith.constant 0 : i32
    %c0_i32_1 = arith.constant 0 : i32
    return %c0_i32, %c0_i32_0 : i32, i32
  }
  func.func @transform_4(%arg0: i32) -> (i32, i32) {
    %c0_i32 = arith.constant 0 : i32
    %c0_i32_0 = arith.constant 0 : i32
    %c0_i32_1 = arith.constant 0 : i32
    return %c0_i32, %c0_i32_0 : i32, i32
  }
  func.func @transform_5(%arg0: i32) -> (i32, i32) {
    %c0_i32 = arith.constant 0 : i32
    %c0_i32_0 = arith.constant 0 : i32
    %c0_i32_1 = arith.constant 0 : i32
    return %c0_i32, %c0_i32_0 : i32, i32
  }
  func.func @transform_6(%arg0: i32) -> (i32, i32) {
    %c0_i32 = arith.constant 0 : i32
    %c0_i32_0 = arith.constant 0 : i32
    %c0_i32_1 = arith.constant 0 : i32
    return %c0_i32, %c0_i32_0 : i32, i32
  }
  func.func @transform_7(%arg0: i32) -> (i32, i32, i32) {
    %c0_i32 = arith.constant 0 : i32
    %c0_i32_0 = arith.constant 0 : i32
    %c0_i32_1 = arith.constant 0 : i32
    %c0_i32_2 = arith.constant 0 : i32
    return %c0_i32, %c0_i32_0, %c0_i32_1 : i32, i32, i32
  }
  func.func @transform_8(%arg0: i32) -> (i32, i32) {
    %c0_i32 = arith.constant 0 : i32
    %c0_i32_0 = arith.constant 0 : i32
    %c0_i32_1 = arith.constant 0 : i32
    return %c0_i32, %c0_i32_0 : i32, i32
  }
  func.func @transform_9(%arg0: i32) -> (i32, i32) {
    %c0_i32 = arith.constant 0 : i32
    %c0_i32_0 = arith.constant 0 : i32
    %c0_i32_1 = arith.constant 0 : i32
    return %c0_i32, %c0_i32_0 : i32, i32
  }
  func.func @transform_10(%arg0: i32) -> (i32, i32, i32) {
    %c0_i32 = arith.constant 0 : i32
    %c0_i32_0 = arith.constant 0 : i32
    %c0_i32_1 = arith.constant 0 : i32
    %c0_i32_2 = arith.constant 0 : i32
    return %c0_i32, %c0_i32_0, %c0_i32_1 : i32, i32, i32
  }
}

</mosaic_0001>

<llo_original>
// kernel: tpu_custom_call.1
$region0: #{tpu_custom_call.1}
  #allocation0 [shape = 'u32[]', space=smem, size = 0x4, offset = 0x4, fixed_abs, tag = 'smem constant byte address 0x4 - core index']
  #allocation1 [shape = 'u32[144,128]{1,0:T(1,128)}', space=vmem, size = 0x12000, scoped, tag = 'internal scratch']
  #allocation2 [shape = 'f32[8,546]{1,0:T(8,128)}', space=vmem, size = 0x5000, scoped, tag = 'scratch operand']
  %s0 = inlined_call_operand.hbm [shape: f32[2,64,256], index: 0, kind: input, shape index: {}]
  %s1 = inlined_call_operand.vmem [shape: f32[32,64], index: 1, kind: input, shape index: {}]
  %s2 = inlined_call_operand.vmem [shape: f32[32,1], index: 2, kind: input, shape index: {}]
  %s3 = inlined_call_operand.vmem [shape: f32[16,32], index: 3, kind: input, shape index: {}]
  %s4 = inlined_call_operand.vmem [shape: f32[16,1], index: 4, kind: input, shape index: {}]
  %s5 = inlined_call_operand.hbm [shape: f32[8,16], index: 5, kind: input, shape index: {}]
  %s6 = inlined_call_operand.vmem [shape: f32[8,1], index: 6, kind: input, shape index: {}]
  %s7 = inlined_call_operand.vmem [shape: f32[3,8,24], index: 7, kind: input, shape index: {}]
  %s8 = inlined_call_operand.vmem [shape: f32[8,1], index: 8, kind: input, shape index: {}]
  %s9 = inlined_call_operand.vmem [shape: f32[4,512], index: 9, kind: input, shape index: {}]
  %s10 = inlined_call_operand.hbm [shape: f32[2,8,256], index: 10, kind: output, shape index: {}]
  %s11 = sld [smem:[#allocation0]]
  $region58: #{tpu_custom_call.1} parent=0
    _
  %s13 = ssub.s32 1, %s11
  %s14 = scalar_select 0, %s13, %s11
  $region1: #{tpu_custom_call.1} parent=0
    #allocation3 [shape = 'u8[131072]{0}', space=vmem, size = 0x20000, scoped, tag = 'input window, operand 0, single buffered']
    #allocation4 [shape = 's32[1]{0}', space=sflag, size = 0x4, scoped, tag = 'scoped memory for tpu_custom_call.1']
    #allocation5 [shape = 's32[1]{0}', space=sflag, size = 0x4, scoped, tag = 'scoped memory for tpu_custom_call.1']
    #allocation6 [shape = 'u8[4096]{0}', space=vmem, size = 0x1000, scoped, tag = 'input window, operand 5, single buffered']
    #allocation7 [shape = 's32[1]{0}', space=sflag, size = 0x4, scoped, tag = 'scoped memory for tpu_custom_call.1']
    #allocation8 [shape = 'u8[16384]{0}', space=vmem, size = 0x4000, scoped, tag = 'output window, operand 0, single buffered']
    %15 = vsyncpa [#allocation4], 0
    %16 = vsyncpa [#allocation7], 0
    %17 = vsyncpa [#allocation5], 0
    // Predicated region
    $region2: #{tpu_custom_call.1} parent=1 // pred_check
      _
    $region3: #{tpu_custom_call.1} parent=1 // pred_check_branch
      %19 = sbr.rel (0) target = $region5
    $region4: #{tpu_custom_call.1} parent=1 // pred_region
      %s21 = ssub.s32 4096, 4096
      %22 = vsyncadd [#allocation4], %s21
      %s23 = sshll.u32 [#allocation3], 4
      %s24 = int_to_ptr.vmem [resolvable:$true] %s23
      %29 = dma.hbm_to_vmem [thread:$0]  %s0, 4096, %s24, [#allocation4], 256, 256, 16
    $region5: #{tpu_custom_call.1} parent=1 // pred_fallthru
      _
    // Predicated region
    $region6: #{tpu_custom_call.1} parent=1 // pred_check
      _
    $region7: #{tpu_custom_call.1} parent=1 // pred_check_branch
      %31 = sbr.rel (0) target = $region9
    $region8: #{tpu_custom_call.1} parent=1 // pred_region
      _
    $region9: #{tpu_custom_call.1} parent=1 // pred_fallthru
      _
    // Predicated region
    $region10: #{tpu_custom_call.1} parent=1 // pred_check
      _
    $region11: #{tpu_custom_call.1} parent=1 // pred_check_branch
      %33 = sbr.rel (0) target = $region13
    $region12: #{tpu_custom_call.1} parent=1 // pred_region
      _
    $region13: #{tpu_custom_call.1} parent=1 // pred_fallthru
      _
    // Predicated region
    $region14: #{tpu_custom_call.1} parent=1 // pred_check
      _
    $region15: #{tpu_custom_call.1} parent=1 // pred_check_branch
      %35 = sbr.rel (0) target = $region17
    $region16: #{tpu_custom_call.1} parent=1 // pred_region
      _
    $region17: #{tpu_custom_call.1} parent=1 // pred_fallthru
      _
    // Predicated region
    $region18: #{tpu_custom_call.1} parent=1 // pred_check
      _
    $region19: #{tpu_custom_call.1} parent=1 // pred_check_branch
      %37 = sbr.rel (0) target = $region21
    $region20: #{tpu_custom_call.1} parent=1 // pred_region
      _
    $region21: #{tpu_custom_call.1} parent=1 // pred_fallthru
      _
    // Predicated region
    $region22: #{tpu_custom_call.1} parent=1 // pred_check
      _
    $region23: #{tpu_custom_call.1} parent=1 // pred_check_branch
      %39 = sbr.rel (0) target = $region25
    $region24: #{tpu_custom_call.1} parent=1 // pred_region
      %s41 = ssub.s32 128, 128
      %42 = vsyncadd [#allocation7], %s41
      %s44 = sshll.u32 [#allocation6], 4
      %s45 = int_to_ptr.vmem [resolvable:$true] %s44
      %47 = dma.hbm_to_vmem [thread:$0]  %s5, 128, %s45, [#allocation7]
    $region25: #{tpu_custom_call.1} parent=1 // pred_fallthru
      _
    // Predicated region
    $region26: #{tpu_custom_call.1} parent=1 // pred_check
      _
    $region27: #{tpu_custom_call.1} parent=1 // pred_check_branch
      %49 = sbr.rel (0) target = $region29
    $region28: #{tpu_custom_call.1} parent=1 // pred_region
      _
    $region29: #{tpu_custom_call.1} parent=1 // pred_fallthru
      _
    // Predicated region
    $region30: #{tpu_custom_call.1} parent=1 // pred_check
      _
    $region31: #{tpu_custom_call.1} parent=1 // pred_check_branch
      %51 = sbr.rel (0) target = $region33
    $region32: #{tpu_custom_call.1} parent=1 // pred_region
      _
    $region33: #{tpu_custom_call.1} parent=1 // pred_fallthru
      _
    // Predicated region
    $region34: #{tpu_custom_call.1} parent=1 // pred_check
      _
    $region35: #{tpu_custom_call.1} parent=1 // pred_check_branch
      %53 = sbr.rel (0) target = $region37
    $region36: #{tpu_custom_call.1} parent=1 // pred_region
      _
    $region37: #{tpu_custom_call.1} parent=1 // pred_fallthru
      _
    // Predicated region
    $region38: #{tpu_custom_call.1} parent=1 // pred_check
      _
    $region39: #{tpu_custom_call.1} parent=1 // pred_check_branch
      %55 = sbr.rel (0) target = $region41
    $region40: #{tpu_custom_call.1} parent=1 // pred_region
      _
    $region41: #{tpu_custom_call.1} parent=1 // pred_fallthru
      _
    // Predicated region
    $region42: #{tpu_custom_call.1} parent=1 // pred_check
      _
    $region43: #{tpu_custom_call.1} parent=1 // pred_check_branch
      %57 = sbr.rel (0) target = $region45
    $region44: #{tpu_custom_call.1} parent=1 // pred_region
      %58 = dma.done [#allocation4], 4096
    $region45: #{tpu_custom_call.1} parent=1 // pred_fallthru
      _
    // Predicated region
    $region46: #{tpu_custom_call.1} parent=1 // pred_check
      _
    $region47: #{tpu_custom_call.1} parent=1 // pred_check_branch
      %60 = sbr.rel (0) target = $region49
    $region48: #{tpu_custom_call.1} parent=1 // pred_region
      %61 = dma.done [#allocation7], 128
    $region49: #{tpu_custom_call.1} parent=1 // pred_fallthru
      _
    %v62 = vld [vmem:[#allocation3] sm:$0xff]
    %v63 = vld [vmem:[#allocation3 + $0x8] sm:$0xff]
    %v64 = vld [vmem:[#allocation3 + $0x10] sm:$0xff]
    %v65 = vld [vmem:[#allocation3 + $0x18] sm:$0xff]
    %v66 = vld [vmem:[#allocation3 + $0x20] sm:$0xff]
    %v67 = vld [vmem:[#allocation3 + $0x28] sm:$0xff]
    %v68 = vld [vmem:[#allocation3 + $0x30] sm:$0xff]
    %v69 = vld [vmem:[#allocation3 + $0x38] sm:$0xff]
    %v70 = vld [vmem:[#allocation3 + $0x40] sm:$0xff]
    %v71 = vld [vmem:[#allocation3 + $0x48] sm:$0xff]
    %v72 = vld [vmem:[#allocation3 + $0x50] sm:$0xff]
    %v73 = vld [vmem:[#allocation3 + $0x58] sm:$0xff]
    %v74 = vld [vmem:[#allocation3 + $0x60] sm:$0xff]
    %v75 = vld [vmem:[#allocation3 + $0x68] sm:$0xff]
    %v76 = vld [vmem:[#allocation3 + $0x70] sm:$0xff]
    %v77 = vld [vmem:[#allocation3 + $0x78] sm:$0xff]
    %s78 = scalar_lea.vmem [#allocation3], 128
    %v79 = vld [vmem:[%s78] sm:$0xff]
    %v80 = vld [vmem:[%s78 + $0x8] sm:$0xff]
    %v81 = vld [vmem:[%s78 + $0x10] sm:$0xff]
    %v82 = vld [vmem:[%s78 + $0x18] sm:$0xff]
    %v83 = vld [vmem:[%s78 + $0x20] sm:$0xff]
    %v84 = vld [vmem:[%s78 + $0x28] sm:$0xff]
    %v85 = vld [vmem:[%s78 + $0x30] sm:$0xff]
    %v86 = vld [vmem:[%s78 + $0x38] sm:$0xff]
    %v87 = vld [vmem:[%s78 + $0x40] sm:$0xff]
    %v88 = vld [vmem:[%s78 + $0x48] sm:$0xff]
    %v89 = vld [vmem:[%s78 + $0x50] sm:$0xff]
    %v90 = vld [vmem:[%s78 + $0x58] sm:$0xff]
    %v91 = vld [vmem:[%s78 + $0x60] sm:$0xff]
    %v92 = vld [vmem:[%s78 + $0x68] sm:$0xff]
    %v93 = vld [vmem:[%s78 + $0x70] sm:$0xff]
    %v94 = vld [vmem:[%s78 + $0x78] sm:$0xff]
    %v95 = vld [vmem:[%s1] sm:$0xff]
    %v96 = vld [vmem:[%s1 + $0x8] sm:$0xff]
    %v97 = vld [vmem:[%s1 + $0x10] sm:$0xff]
    %v98 = vld [vmem:[%s1 + $0x18] sm:$0xff]
    %v99 = vld [vmem:[%s2] sm:$0xff]
    %v100 = vld [vmem:[%s2 + $0x8] sm:$0xff]
    %v101 = vld [vmem:[%s2 + $0x10] sm:$0xff]
    %v102 = vld [vmem:[%s2 + $0x18] sm:$0xff]
    %104 = vset.pattern.permute.xlu0 0
    %105 = vperm.xlu0 %104, %v99
    %v106 = vpop.permute.xlu0 %105
    %109 = vset.pattern.permute.xlu0 0
    %110 = vperm.xlu0 %109, %v100
    %v111 = vpop.permute.xlu0 %110
    %114 = vset.pattern.permute.xlu0 0
    %115 = vperm.xlu0 %114, %v101
    %v116 = vpop.permute.xlu0 %115
    %119 = vset.pattern.permute.xlu0 0
    %120 = vperm.xlu0 %119, %v102
    %v121 = vpop.permute.xlu0 %120
    %vm123 = vcmask 523264
    %v125 = vsel %vm123, %v95, 0
    %v128 = vsel %vm123, %v96, 0
    %v131 = vsel %vm123, %v97, 0
    %v134 = vsel %vm123, %v98, 0
    %136 = vmatprep.subr.mxu0 %v63
    %137 = vmatpush1.msra.mxu0 %v62
    %138 = vmatprep.subr.mxu0 %v65
    %139 = vmatpush1.msra.mxu0 %v64
    %140 = vmatprep.subr.mxu0 %v67
    %141 = vmatpush1.msra.mxu0 %v66
    %142 = vmatprep.subr.mxu0 %v69
    %143 = vmatpush1.msra.mxu0 %v68
    %144 = vmatprep.subr.mxu0 %v71
    %145 = vmatpush1.msra.mxu0 %v70
    %146 = vmatprep.subr.mxu0 %v73
    %147 = vmatpush1.msra.mxu0 %v72
    %148 = vmatprep.subr.mxu0 %v75
    %149 = vmatpush1.msra.mxu0 %v74
    %150 = vmatprep.subr.mxu0 %v77
    %151 = vmatpush1.msra.mxu0 %v76
    %152 = vmatprep.subr.mxu0 0.0
    %153 = vmatpush1.msra.mxu0 0.0
    %154 = vmatprep.subr.mxu0 0.0
    %155 = vmatpush1.msra.mxu0 0.0
    %156 = vmatprep.subr.mxu0 0.0
    %157 = vmatpush1.msra.mxu0 0.0
    %158 = vmatprep.subr.mxu0 0.0
    %159 = vmatpush1.msra.mxu0 0.0
    %160 = vmatprep.subr.mxu0 0.0
    %161 = vmatpush1.msra.mxu0 0.0
    %162 = vmatprep.subr.mxu0 0.0
    %163 = vmatpush1.msra.mxu0 0.0
    %164 = vmatprep.subr.mxu0 0.0
    %165 = vmatpush1.msra.mxu0 0.0
    %166 = vmatprep.subr.mxu0 0.0
    %167 = vmatpush1.msra.mxu0 0.0
    %168 = vmatprep.subr.mxu0 0.0
    %169 = vmatpush1.msra.mxu0 0.0
    %170 = vmatprep.subr.mxu0 0.0
    %171 = vmatpush1.msra.mxu0 0.0
    %172 = vmatprep.subr.mxu0 0.0
    %173 = vmatpush1.msra.mxu0 0.0
    %174 = vmatprep.subr.mxu0 0.0
    %175 = vmatpush1.msra.mxu0 0.0
    %176 = vmatprep.subr.mxu0 0.0
    %177 = vmatpush1.msra.mxu0 0.0
    %178 = vmatprep.subr.mxu0 0.0
    %179 = vmatpush1.msra.mxu0 0.0
    %180 = vmatprep.subr.mxu0 0.0
    %181 = vmatpush1.msra.mxu0 0.0
    %182 = vmatprep.subr.mxu0 0.0
    %183 = vmatpush1.msra.mxu0 0.0
    %184 = vmatprep.subr.mxu0 0.0
    %185 = vmatpush1.msra.mxu0 0.0
    %186 = vmatprep.subr.mxu0 0.0
    %187 = vmatpush1.msra.mxu0 0.0
    %188 = vmatprep.subr.mxu0 0.0
    %189 = vmatpush1.msra.mxu0 0.0
    %190 = vmatprep.subr.mxu0 0.0
    %191 = vmatpush1.msra.mxu0 0.0
    %192 = vmatprep.subr.mxu0 0.0
    %193 = vmatpush1.msra.mxu0 0.0
    %194 = vmatprep.subr.mxu0 0.0
    %195 = vmatpush1.msra.mxu0 0.0
    %196 = vmatprep.subr.mxu0 0.0
    %197 = vmatpush1.msra.mxu0 0.0
    %198 = vmatprep.subr.mxu0 0.0
    %199 = vmatpush1.msra.mxu0 0.0
    %200 = vmatprep.mubr.f32.mxu0 0.0
    %201 = vmatmul.mubr.f32.gmra.mrb[0].mxu0 %v125
    %v202 = vpop.f32.mrb[0].mxu0
    %v203 = vadd.f32 %v106, %v202
    %v204 = vpop.f32.mrb[0].mxu0
    %v205 = vadd.f32 %v106, %v204
    %206 = vmatprep.mubr.f32.mxu0 0.0
    %207 = vmatmul.mubr.f32.gmra.mrb[0].mxu0 %v128
    %v208 = vpop.f32.mrb[0].mxu0
    %v209 = vadd.f32 %v111, %v208
    %v210 = vpop.f32.mrb[0].mxu0
    %v211 = vadd.f32 %v111, %v210
    %212 = vmatprep.mubr.f32.mxu0 0.0
    %213 = vmatmul.mubr.f32.gmra.mrb[0].mxu0 %v131
    %v214 = vpop.f32.mrb[0].mxu0
    %v215 = vadd.f32 %v116, %v214
    %v216 = vpop.f32.mrb[0].mxu0
    %v217 = vadd.f32 %v116, %v216
    %218 = vmatprep.mubr.f32.mxu0 0.0
    %219 = vmatmul.mubr.f32.gmra.mrb[0].mxu0 %v134
    %v220 = vpop.f32.mrb[0].mxu0
    %v221 = vadd.f32 %v121, %v220
    %v222 = vpop.f32.mrb[0].mxu0
    %v223 = vadd.f32 %v121, %v222
    %224 = vdwg.mxu0
    %225 = vmatprep.subr.mxu0 %v80
    %226 = vmatpush1.msra.mxu0 %v79
    %227 = vmatprep.subr.mxu0 %v82
    %228 = vmatpush1.msra.mxu0 %v81
    %229 = vmatprep.subr.mxu0 %v84
    %230 = vmatpush1.msra.mxu0 %v83
    %231 = vmatprep.subr.mxu0 %v86
    %232 = vmatpush1.msra.mxu0 %v85
    %233 = vmatprep.subr.mxu0 %v88
    %234 = vmatpush1.msra.mxu0 %v87
    %235 = vmatprep.subr.mxu0 %v90
    %236 = vmatpush1.msra.mxu0 %v89
    %237 = vmatprep.subr.mxu0 %v92
    %238 = vmatpush1.msra.mxu0 %v91
    %239 = vmatprep.subr.mxu0 %v94
    %240 = vmatpush1.msra.mxu0 %v93
    %241 = vmatprep.subr.mxu0 0.0
    %242 = vmatpush1.msra.mxu0 0.0
    %243 = vmatprep.subr.mxu0 0.0
    %244 = vmatpush1.msra.mxu0 0.0
    %245 = vmatprep.subr.mxu0 0.0
    %246 = vmatpush1.msra.mxu0 0.0
    %247 = vmatprep.subr.mxu0 0.0
    %248 = vmatpush1.msra.mxu0 0.0
    %249 = vmatprep.subr.mxu0 0.0
    %250 = vmatpush1.msra.mxu0 0.0
    %251 = vmatprep.subr.mxu0 0.0
    %252 = vmatpush1.msra.mxu0 0.0
    %253 = vmatprep.subr.mxu0 0.0
    %254 = vmatpush1.msra.mxu0 0.0
    %255 = vmatprep.subr.mxu0 0.0
    %256 = vmatpush1.msra.mxu0 0.0
    %257 = vmatprep.subr.mxu0 0.0
    %258 = vmatpush1.msra.mxu0 0.0
    %259 = vmatprep.subr.mxu0 0.0
    %260 = vmatpush1.msra.mxu0 0.0
    %261 = vmatprep.subr.mxu0 0.0
    %262 = vmatpush1.msra.mxu0 0.0
    %263 = vmatprep.subr.mxu0 0.0
    %264 = vmatpush1.msra.mxu0 0.0
    %265 = vmatprep.subr.mxu0 0.0
    %266 = vmatpush1.msra.mxu0 0.0
    %267 = vmatprep.subr.mxu0 0.0
    %268 = vmatpush1.msra.mxu0 0.0
    %269 = vmatprep.subr.mxu0 0.0
    %270 = vmatpush1.msra.mxu0 0.0
    %271 = vmatprep.subr.mxu0 0.0
    %272 = vmatpush1.msra.mxu0 0.0
    %273 = vmatprep.subr.mxu0 0.0
    %274 = vmatpush1.msra.mxu0 0.0
    %275 = vmatprep.subr.mxu0 0.0
    %276 = vmatpush1.msra.mxu0 0.0
    %277 = vmatprep.subr.mxu0 0.0
    %278 = vmatpush1.msra.mxu0 0.0
    %279 = vmatprep.subr.mxu0 0.0
    %280 = vmatpush1.msra.mxu0 0.0
    %281 = vmatprep.subr.mxu0 0.0
    %282 = vmatpush1.msra.mxu0 0.0
    %283 = vmatprep.subr.mxu0 0.0
    %284 = vmatpush1.msra.mxu0 0.0
    %285 = vmatprep.subr.mxu0 0.0
    %286 = vmatpush1.msra.mxu0 0.0
    %287 = vmatprep.subr.mxu0 0.0
    %288 = vmatpush1.msra.mxu0 0.0
    %289 = vmatprep.mubr.f32.mxu0 0.0
    %290 = vmatmul.mubr.f32.gmra.mrb[0].mxu0 %v125
    %v291 = vpop.f32.mrb[0].mxu0
    %v292 = vadd.f32 %v106, %v291
    %v293 = vpop.f32.mrb[0].mxu0
    %v294 = vadd.f32 %v106, %v293
    %295 = vmatprep.mubr.f32.mxu0 0.0
    %296 = vmatmul.mubr.f32.gmra.mrb[0].mxu0 %v128
    %v297 = vpop.f32.mrb[0].mxu0
    %v298 = vadd.f32 %v111, %v297
    %v299 = vpop.f32.mrb[0].mxu0
    %v300 = vadd.f32 %v111, %v299
    %301 = vmatprep.mubr.f32.mxu0 0.0
    %302 = vmatmul.mubr.f32.gmra.mrb[0].mxu0 %v131
    %v303 = vpop.f32.mrb[0].mxu0
    %v304 = vadd.f32 %v116, %v303
    %v305 = vpop.f32.mrb[0].mxu0
    %v306 = vadd.f32 %v116, %v305
    %307 = vmatprep.mubr.f32.mxu0 0.0
    %308 = vmatmul.mubr.f32.gmra.mrb[0].mxu0 %v134
    %v309 = vpop.f32.mrb[0].mxu0
    %v310 = vadd.f32 %v121, %v309
    %v311 = vpop.f32.mrb[0].mxu0
    %v312 = vadd.f32 %v121, %v311
    %313 = vdwg.mxu0
    %v314 = vmax.f32 %v203, 0.0
    %v315 = vmax.f32 %v205, 0.0
    %v316 = vmax.f32 %v292, 0.0
    %v317 = vmax.f32 %v294, 0.0
    %v318 = vmax.f32 %v209, 0.0
    %v319 = vmax.f32 %v211, 0.0
    %v320 = vmax.f32 %v298, 0.0
    %v321 = vmax.f32 %v300, 0.0
    %v322 = vmax.f32 %v215, 0.0
    %v323 = vmax.f32 %v217, 0.0
    %v324 = vmax.f32 %v304, 0.0
    %v325 = vmax.f32 %v306, 0.0
    %v326 = vmax.f32 %v221, 0.0
    %v327 = vmax.f32 %v223, 0.0
    %v328 = vmax.f32 %v310, 0.0
    %v329 = vmax.f32 %v312, 0.0
    %v330 = vld [vmem:[%s3] sm:$0xff]
    %v331 = vld [vmem:[%s3 + $0x8] sm:$0xff]
    %v332 = vld [vmem:[%s4] sm:$0xff]
    %v333 = vld [vmem:[%s4 + $0x8] sm:$0xff]
    %335 = vset.pattern.permute.xlu0 0
    %336 = vperm.xlu0 %335, %v332
    %v337 = vpop.permute.xlu0 %336
    %340 = vset.pattern.permute.xlu0 0
    %341 = vperm.xlu0 %340, %v333
    %v342 = vpop.permute.xlu0 %341
    %vm344 = vcmask 261120
    %v346 = vsel %vm344, %v330, 0
    %v349 = vsel %vm344, %v331, 0
    %351 = vmatprep.subr.mxu0 %v315
    %352 = vmatpush1.msra.mxu0 %v314
    %353 = vmatprep.subr.mxu0 %v319
    %354 = vmatpush1.msra.mxu0 %v318
    %355 = vmatprep.subr.mxu0 %v323
    %356 = vmatpush1.msra.mxu0 %v322
    %357 = vmatprep.subr.mxu0 %v327
    %358 = vmatpush1.msra.mxu0 %v326
    %359 = vmatprep.subr.mxu0 0.0
    %360 = vmatpush1.msra.mxu0 0.0
    %361 = vmatprep.subr.mxu0 0.0
    %362 = vmatpush1.msra.mxu0 0.0
    %363 = vmatprep.subr.mxu0 0.0
    %364 = vmatpush1.msra.mxu0 0.0
    %365 = vmatprep.subr.mxu0 0.0
    %366 = vmatpush1.msra.mxu0 0.0
    %367 = vmatprep.subr.mxu0 0.0
    %368 = vmatpush1.msra.mxu0 0.0
    %369 = vmatprep.subr.mxu0 0.0
    %370 = vmatpush1.msra.mxu0 0.0
    %371 = vmatprep.subr.mxu0 0.0
    %372 = vmatpush1.msra.mxu0 0.0
    %373 = vmatprep.subr.mxu0 0.0
    %374 = vmatpush1.msra.mxu0 0.0
    %375 = vmatprep.subr.mxu0 0.0
    %376 = vmatpush1.msra.mxu0 0.0
    %377 = vmatprep.subr.mxu0 0.0
    %378 = vmatpush1.msra.mxu0 0.0
    %379 = vmatprep.subr.mxu0 0.0
    %380 = vmatpush1.msra.mxu0 0.0
    %381 = vmatprep.subr.mxu0 0.0
    %382 = vmatpush1.msra.mxu0 0.0
    %383 = vmatprep.subr.mxu0 0.0
    %384 = vmatpush1.msra.mxu0 0.0
    %385 = vmatprep.subr.mxu0 0.0
    %386 = vmatpush1.msra.mxu0 0.0
    %387 = vmatprep.subr.mxu0 0.0
    %388 = vmatpush1.msra.mxu0 0.0
    %389 = vmatprep.subr.mxu0 0.0
    %390 = vmatpush1.msra.mxu0 0.0
    %391 = vmatprep.subr.mxu0 0.0
    %392 = vmatpush1.msra.mxu0 0.0
    %393 = vmatprep.subr.mxu0 0.0
    %394 = vmatpush1.msra.mxu0 0.0
    %395 = vmatprep.subr.mxu0 0.0
    %396 = vmatpush1.msra.mxu0 0.0
    %397 = vmatprep.subr.mxu0 0.0
    %398 = vmatpush1.msra.mxu0 0.0
    %399 = vmatprep.subr.mxu0 0.0
    %400 = vmatpush1.msra.mxu0 0.0
    %401 = vmatprep.subr.mxu0 0.0
    %402 = vmatpush1.msra.mxu0 0.0
    %403 = vmatprep.subr.mxu0 0.0
    %404 = vmatpush1.msra.mxu0 0.0
    %405 = vmatprep.subr.mxu0 0.0
    %406 = vmatpush1.msra.mxu0 0.0
    %407 = vmatprep.subr.mxu0 0.0
    %408 = vmatpush1.msra.mxu0 0.0
    %409 = vmatprep.subr.mxu0 0.0
    %410 = vmatpush1.msra.mxu0 0.0
    %411 = vmatprep.subr.mxu0 0.0
    %412 = vmatpush1.msra.mxu0 0.0
    %413 = vmatprep.subr.mxu0 0.0
    %414 = vmatpush1.msra.mxu0 0.0
    %415 = vmatprep.mubr.f32.mxu0 0.0
    %416 = vmatmul.mubr.f32.gmra.mrb[0].mxu0 %v346
    %v417 = vpop.f32.mrb[0].mxu0
    %v418 = vadd.f32 %v337, %v417
    %v419 = vpop.f32.mrb[0].mxu0
    %v420 = vadd.f32 %v337, %v419
    %421 = vmatprep.mubr.f32.mxu0 0.0
    %422 = vmatmul.mubr.f32.gmra.mrb[0].mxu0 %v349
    %v423 = vpop.f32.mrb[0].mxu0
    %v424 = vadd.f32 %v342, %v423
    %v425 = vpop.f32.mrb[0].mxu0
    %v426 = vadd.f32 %v342, %v425
    %427 = vdwg.mxu0
    %428 = vmatprep.subr.mxu0 %v317
    %429 = vmatpush1.msra.mxu0 %v316
    %430 = vmatprep.subr.mxu0 %v321
    %431 = vmatpush1.msra.mxu0 %v320
    %432 = vmatprep.subr.mxu0 %v325
    %433 = vmatpush1.msra.mxu0 %v324
    %434 = vmatprep.subr.mxu0 %v329
    %435 = vmatpush1.msra.mxu0 %v328
    %436 = vmatprep.subr.mxu0 0.0
    %437 = vmatpush1.msra.mxu0 0.0
    %438 = vmatprep.subr.mxu0 0.0
    %439 = vmatpush1.msra.mxu0 0.0
    %440 = vmatprep.subr.mxu0 0.0
    %441 = vmatpush1.msra.mxu0 0.0
    %442 = vmatprep.subr.mxu0 0.0
    %443 = vmatpush1.msra.mxu0 0.0
    %444 = vmatprep.subr.mxu0 0.0
    %445 = vmatpush1.msra.mxu0 0.0
    %446 = vmatprep.subr.mxu0 0.0
    %447 = vmatpush1.msra.mxu0 0.0
    %448 = vmatprep.subr.mxu0 0.0
    %449 = vmatpush1.msra.mxu0 0.0
    %450 = vmatprep.subr.mxu0 0.0
    %451 = vmatpush1.msra.mxu0 0.0
    %452 = vmatprep.subr.mxu0 0.0
    %453 = vmatpush1.msra.mxu0 0.0
    %454 = vmatprep.subr.mxu0 0.0
    %455 = vmatpush1.msra.mxu0 0.0
    %456 = vmatprep.subr.mxu0 0.0
    %457 = vmatpush1.msra.mxu0 0.0
    %458 = vmatprep.subr.mxu0 0.0
    %459 = vmatpush1.msra.mxu0 0.0
    %460 = vmatprep.subr.mxu0 0.0
    %461 = vmatpush1.msra.mxu0 0.0
    %462 = vmatprep.subr.mxu0 0.0
    %463 = vmatpush1.msra.mxu0 0.0
    %464 = vmatprep.subr.mxu0 0.0
    %465 = vmatpush1.msra.mxu0 0.0
    %466 = vmatprep.subr.mxu0 0.0
    %467 = vmatpush1.msra.mxu0 0.0
    %468 = vmatprep.subr.mxu0 0.0
    %469 = vmatpush1.msra.mxu0 0.0
    %470 = vmatprep.subr.mxu0 0.0
    %471 = vmatpush1.msra.mxu0 0.0
    %472 = vmatprep.subr.mxu0 0.0
    %473 = vmatpush1.msra.mxu0 0.0
    %474 = vmatprep.subr.mxu0 0.0
    %475 = vmatpush1.msra.mxu0 0.0
    %476 = vmatprep.subr.mxu0 0.0
    %477 = vmatpush1.msra.mxu0 0.0
    %478 = vmatprep.subr.mxu0 0.0
    %479 = vmatpush1.msra.mxu0 0.0
    %480 = vmatprep.subr.mxu0 0.0
    %481 = vmatpush1.msra.mxu0 0.0
    %482 = vmatprep.subr.mxu0 0.0
    %483 = vmatpush1.msra.mxu0 0.0
    %484 = vmatprep.subr.mxu0 0.0
    %485 = vmatpush1.msra.mxu0 0.0
    %486 = vmatprep.subr.mxu0 0.0
    %487 = vmatpush1.msra.mxu0 0.0
    %488 = vmatprep.subr.mxu0 0.0
    %489 = vmatpush1.msra.mxu0 0.0
    %490 = vmatprep.subr.mxu0 0.0
    %491 = vmatpush1.msra.mxu0 0.0
    %492 = vmatprep.mubr.f32.mxu0 0.0
    %493 = vmatmul.mubr.f32.gmra.mrb[0].mxu0 %v346
    %v494 = vpop.f32.mrb[0].mxu0
    %v495 = vadd.f32 %v337, %v494
    %v496 = vpop.f32.mrb[0].mxu0
    %v497 = vadd.f32 %v337, %v496
    %498 = vmatprep.mubr.f32.mxu0 0.0
    %499 = vmatmul.mubr.f32.gmra.mrb[0].mxu0 %v349
    %v500 = vpop.f32.mrb[0].mxu0
    %v501 = vadd.f32 %v342, %v500
    %v502 = vpop.f32.mrb[0].mxu0
    %v503 = vadd.f32 %v342, %v502
    %504 = vdwg.mxu0
    %v505 = vmax.f32 %v418, 0.0
    %v506 = vmax.f32 %v420, 0.0
    %v507 = vmax.f32 %v495, 0.0
    %v508 = vmax.f32 %v497, 0.0
    %v509 = vmax.f32 %v424, 0.0
    %v510 = vmax.f32 %v426, 0.0
    %v511 = vmax.f32 %v501, 0.0
    %v512 = vmax.f32 %v503, 0.0
    %v513 = vld [vmem:[#allocation6] sm:$0xff]
    %v514 = vld [vmem:[%s6] sm:$0xff]
    %516 = vset.pattern.permute.xlu0 0
    %517 = vperm.xlu0 %516, %v514
    %v518 = vpop.permute.xlu0 %517
    %vm520 = vcmask 130048
    %v522 = vsel %vm520, %v513, 0
    %524 = vmatprep.subr.mxu0 %v506
    %525 = vmatpush1.msra.mxu0 %v505
    %526 = vmatprep.subr.mxu0 %v510
    %527 = vmatpush1.msra.mxu0 %v509
    %528 = vmatprep.subr.mxu0 0.0
    %529 = vmatpush1.msra.mxu0 0.0
    %530 = vmatprep.subr.mxu0 0.0
    %531 = vmatpush1.msra.mxu0 0.0
    %532 = vmatprep.subr.mxu0 0.0
    %533 = vmatpush1.msra.mxu0 0.0
    %534 = vmatprep.subr.mxu0 0.0
    %535 = vmatpush1.msra.mxu0 0.0
    %536 = vmatprep.subr.mxu0 0.0
    %537 = vmatpush1.msra.mxu0 0.0
    %538 = vmatprep.subr.mxu0 0.0
    %539 = vmatpush1.msra.mxu0 0.0
    %540 = vmatprep.subr.mxu0 0.0
    %541 = vmatpush1.msra.mxu0 0.0
    %542 = vmatprep.subr.mxu0 0.0
    %543 = vmatpush1.msra.mxu0 0.0
    %544 = vmatprep.subr.mxu0 0.0
    %545 = vmatpush1.msra.mxu0 0.0
    %546 = vmatprep.subr.mxu0 0.0
    %547 = vmatpush1.msra.mxu0 0.0
    %548 = vmatprep.subr.mxu0 0.0
    %549 = vmatpush1.msra.mxu0 0.0
    %550 = vmatprep.subr.mxu0 0.0
    %551 = vmatpush1.msra.mxu0 0.0
    %552 = vmatprep.subr.mxu0 0.0
    %553 = vmatpush1.msra.mxu0 0.0
    %554 = vmatprep.subr.mxu0 0.0
    %555 = vmatpush1.msra.mxu0 0.0
    %556 = vmatprep.subr.mxu0 0.0
    %557 = vmatpush1.msra.mxu0 0.0
    %558 = vmatprep.subr.mxu0 0.0
    %559 = vmatpush1.msra.mxu0 0.0
    %560 = vmatprep.subr.mxu0 0.0
    %561 = vmatpush1.msra.mxu0 0.0
    %562 = vmatprep.subr.mxu0 0.0
    %563 = vmatpush1.msra.mxu0 0.0
    %564 = vmatprep.subr.mxu0 0.0
    %565 = vmatpush1.msra.mxu0 0.0
    %566 = vmatprep.subr.mxu0 0.0
    %567 = vmatpush1.msra.mxu0 0.0
    %568 = vmatprep.subr.mxu0 0.0
    %569 = vmatpush1.msra.mxu0 0.0
    %570 = vmatprep.subr.mxu0 0.0
    %571 = vmatpush1.msra.mxu0 0.0
    %572 = vmatprep.subr.mxu0 0.0
    %573 = vmatpush1.msra.mxu0 0.0
    %574 = vmatprep.subr.mxu0 0.0
    %575 = vmatpush1.msra.mxu0 0.0
    %576 = vmatprep.subr.mxu0 0.0
    %577 = vmatpush1.msra.mxu0 0.0
    %578 = vmatprep.subr.mxu0 0.0
    %579 = vmatpush1.msra.mxu0 0.0
    %580 = vmatprep.subr.mxu0 0.0
    %581 = vmatpush1.msra.mxu0 0.0
    %582 = vmatprep.subr.mxu0 0.0
    %583 = vmatpush1.msra.mxu0 0.0
    %584 = vmatprep.subr.mxu0 0.0
    %585 = vmatpush1.msra.mxu0 0.0
    %586 = vmatprep.subr.mxu0 0.0
    %587 = vmatpush1.msra.mxu0 0.0
    %588 = vmatprep.mubr.f32.mxu0 0.0
    %589 = vmatmul.mubr.f32.gmra.mrb[0].mxu0 %v522
    %v590 = vpop.f32.mrb[0].mxu0
    %v591 = vadd.f32 %v518, %v590
    %v592 = vpop.f32.mrb[0].mxu0
    %v593 = vadd.f32 %v518, %v592
    %594 = vdwg.mxu0
    %595 = vmatprep.subr.mxu0 %v508
    %596 = vmatpush1.msra.mxu0 %v507
    %597 = vmatprep.subr.mxu0 %v512
    %598 = vmatpush1.msra.mxu0 %v511
    %599 = vmatprep.subr.mxu0 0.0
    %600 = vmatpush1.msra.mxu0 0.0
    %601 = vmatprep.subr.mxu0 0.0
    %602 = vmatpush1.msra.mxu0 0.0
    %603 = vmatprep.subr.mxu0 0.0
    %604 = vmatpush1.msra.mxu0 0.0
    %605 = vmatprep.subr.mxu0 0.0
    %606 = vmatpush1.msra.mxu0 0.0
    %607 = vmatprep.subr.mxu0 0.0
    %608 = vmatpush1.msra.mxu0 0.0
    %609 = vmatprep.subr.mxu0 0.0
    %610 = vmatpush1.msra.mxu0 0.0
    %611 = vmatprep.subr.mxu0 0.0
    %612 = vmatpush1.msra.mxu0 0.0
    %613 = vmatprep.subr.mxu0 0.0
    %614 = vmatpush1.msra.mxu0 0.0
    %615 = vmatprep.subr.mxu0 0.0
    %616 = vmatpush1.msra.mxu0 0.0
    %617 = vmatprep.subr.mxu0 0.0
    %618 = vmatpush1.msra.mxu0 0.0
    %619 = vmatprep.subr.mxu0 0.0
    %620 = vmatpush1.msra.mxu0 0.0
    %621 = vmatprep.subr.mxu0 0.0
    %622 = vmatpush1.msra.mxu0 0.0
    %623 = vmatprep.subr.mxu0 0.0
    %624 = vmatpush1.msra.mxu0 0.0
    %625 = vmatprep.subr.mxu0 0.0
    %626 = vmatpush1.msra.mxu0 0.0
    %627 = vmatprep.subr.mxu0 0.0
    %628 = vmatpush1.msra.mxu0 0.0
    %629 = vmatprep.subr.mxu0 0.0
    %630 = vmatpush1.msra.mxu0 0.0
    %631 = vmatprep.subr.mxu0 0.0
    %632 = vmatpush1.msra.mxu0 0.0
    %633 = vmatprep.subr.mxu0 0.0
    %634 = vmatpush1.msra.mxu0 0.0
    %635 = vmatprep.subr.mxu0 0.0
    %636 = vmatpush1.msra.mxu0 0.0
    %637 = vmatprep.subr.mxu0 0.0
    %638 = vmatpush1.msra.mxu0 0.0
    %639 = vmatprep.subr.mxu0 0.0
    %640 = vmatpush1.msra.mxu0 0.0
    %641 = vmatprep.subr.mxu0 0.0
    %642 = vmatpush1.msra.mxu0 0.0
    %643 = vmatprep.subr.mxu0 0.0
    %644 = vmatpush1.msra.mxu0 0.0
    %645 = vmatprep.subr.mxu0 0.0
    %646 = vmatpush1.msra.mxu0 0.0
    %647 = vmatprep.subr.mxu0 0.0
    %648 = vmatpush1.msra.mxu0 0.0
    %649 = vmatprep.subr.mxu0 0.0
    %650 = vmatpush1.msra.mxu0 0.0
    %651 = vmatprep.subr.mxu0 0.0
    %652 = vmatpush1.msra.mxu0 0.0
    %653 = vmatprep.subr.mxu0 0.0
    %654 = vmatpush1.msra.mxu0 0.0
    %655 = vmatprep.subr.mxu0 0.0
    %656 = vmatpush1.msra.mxu0 0.0
    %657 = vmatprep.subr.mxu0 0.0
    %658 = vmatpush1.msra.mxu0 0.0
    %659 = vmatprep.mubr.f32.mxu0 0.0
    %660 = vmatmul.mubr.f32.gmra.mrb[0].mxu0 %v522
    %v661 = vpop.f32.mrb[0].mxu0
    %v662 = vadd.f32 %v518, %v661
    %v663 = vpop.f32.mrb[0].mxu0
    %v664 = vadd.f32 %v518, %v663
    %665 = vdwg.mxu0
    %v666 = vmax.f32 %v591, 0.0
    %v667 = vmax.f32 %v593, 0.0
    %v668 = vmax.f32 %v662, 0.0
    %v669 = vmax.f32 %v664, 0.0
    %vm670 = vcmask 138240
    %671 = vst.msk [vmem:[#allocation2] sm:$0xff] %vm670, 0.0
    %vm672 = vcmask 277640
    %673 = vst.msk [vmem:[#allocation2 + $0x20] sm:$0xff] %vm672, 0.0
    %678 = vrot.lane.b32.xlu0 %v666, 17
    %v679 = vpop.permute.xlu0 %678
    %680 = vrot.lane.b32.xlu0 %v667, 17
    %v681 = vpop.permute.xlu0 %680
    %682 = vrot.lane.b32.xlu0 %v668, 17
    %v683 = vpop.permute.xlu0 %682
    %684 = vrot.lane.b32.xlu0 %v669, 17
    %v685 = vpop.permute.xlu0 %684
    %v686 = vsel %vm670, %v679, %v681
    %v687 = vsel %vm670, %v681, %v683
    %v688 = vsel %vm670, %v683, %v685
    %vm694 = vcmask 1047688
    %695 = vst.msk [vmem:[#allocation2] sm:$0xff] %vm694, %v679
    %696 = vst [vmem:[#allocation2 + $0x8] sm:$0xff] %v686
    %697 = vst [vmem:[#allocation2 + $0x10] sm:$0xff] %v687
    %698 = vst [vmem:[#allocation2 + $0x18] sm:$0xff] %v688
    %699 = vst.msk [vmem:[#allocation2 + $0x20] sm:$0xff] %vm670, %v685
    %v700 = vld [vmem:[%s9] sm:$0xff]
    %v701 = vld [vmem:[%s9 + $0x8] sm:$0xff]
    %v702 = vld [vmem:[#allocation2] sm:$0xff]
    %v703 = vld [vmem:[#allocation2 + $0x8] sm:$0xff]
    %v704 = vld [vmem:[#allocation2 + $0x10] sm:$0xff]
    %v705 = vld [vmem:[#allocation2 + $0x18] sm:$0xff]
    %v708 = vlaneseq
    %v709 = vshrl.u32 %v708, 7
    %v710 = vsub.s32 0, %v709
    %v711 = vrot.slane %v700, %v710
    %v712 = vlaneseq
    %v713 = vshrl.u32 %v712, 7
    %v714 = vsub.s32 4, %v713
    %v715 = vrot.slane %v700, %v714
    %v716 = vlaneseq
    %v717 = vshrl.u32 %v716, 7
    %v718 = vsub.s32 0, %v717
    %v719 = vrot.slane %v701, %v718
    %v720 = vlaneseq
    %v721 = vshrl.u32 %v720, 7
    %v722 = vsub.s32 4, %v721
    %v723 = vrot.slane %v701, %v722
    %v728 = vlaneseq
    %v729 = vshrl.u32 %v728, 7
    %v730 = vsub.s32 0, %v729
    %v731 = vrot.slane %v711, %v730
    %v732 = vlaneseq
    %v733 = vshrl.u32 %v732, 7
    %v734 = vsub.s32 0, %v733
    %v735 = vrot.slane %v715, %v734
    %v736 = vlaneseq
    %v737 = vshrl.u32 %v736, 7
    %v738 = vsub.s32 0, %v737
    %v739 = vrot.slane %v719, %v738
    %v740 = vlaneseq
    %v741 = vshrl.u32 %v740, 7
    %v742 = vsub.s32 0, %v741
    %v743 = vrot.slane %v723, %v742
    %v744 = vmul.f32 %v702, %v731
    %v745 = vmul.f32 %v703, %v735
    %v746 = vmul.f32 %v704, %v739
    %v747 = vmul.f32 %v705, %v743
    %v748 = vld [vmem:[#allocation2 + $0x20] sm:$0xff]
    %v749 = vlaneseq
    %v750 = vshrl.u32 %v749, 7
    %v751 = vsub.s32 1, %v750
    %v752 = vrot.slane %v700, %v751
    %v753 = vlaneseq
    %v754 = vshrl.u32 %v753, 7
    %v755 = vsub.s32 5, %v754
    %v756 = vrot.slane %v700, %v755
    %v757 = vlaneseq
    %v758 = vshrl.u32 %v757, 7
    %v759 = vsub.s32 1, %v758
    %v760 = vrot.slane %v701, %v759
    %v761 = vlaneseq
    %v762 = vshrl.u32 %v761, 7
    %v763 = vsub.s32 5, %v762
    %v764 = vrot.slane %v701, %v763
    %v769 = vlaneseq
    %v770 = vshrl.u32 %v769, 7
    %v771 = vsub.s32 1, %v770
    %v772 = vrot.slane %v752, %v771
    %v773 = vlaneseq
    %v774 = vshrl.u32 %v773, 7
    %v775 = vsub.s32 1, %v774
    %v776 = vrot.slane %v756, %v775
    %v777 = vlaneseq
    %v778 = vshrl.u32 %v777, 7
    %v779 = vsub.s32 1, %v778
    %v780 = vrot.slane %v760, %v779
    %v781 = vlaneseq
    %v782 = vshrl.u32 %v781, 7
    %v783 = vsub.s32 1, %v782
    %v784 = vrot.slane %v764, %v783
    %789 = vrot.lane.b32.xlu0 %v772, 2
    %v790 = vpop.permute.xlu0 %789
    %791 = vrot.lane.b32.xlu0 %v776, 2
    %v792 = vpop.permute.xlu0 %791
    %793 = vrot.lane.b32.xlu0 %v780, 2
    %v794 = vpop.permute.xlu0 %793
    %795 = vrot.lane.b32.xlu0 %v784, 2
    %v796 = vpop.permute.xlu0 %795
    %vm797 = vcmask 15360
    %v798 = vsel %vm797, %v790, %v792
    %v799 = vsel %vm797, %v792, %v794
    %v800 = vsel %vm797, %v794, %v796
    %v806 = vmul.f32 %v702, %v790
    %v807 = vmul.f32 %v703, %v798
    %v808 = vmul.f32 %v704, %v799
    %v809 = vmul.f32 %v705, %v800
    %v810 = vmul.f32 %v748, %v796
    %816 = vrot.lane.b32.xlu0 %v702, 127
    %v817 = vpop.permute.xlu0 %816
    %818 = vrot.lane.b32.xlu0 %v703, 127
    %v819 = vpop.permute.xlu0 %818
    %820 = vrot.lane.b32.xlu0 %v704, 127
    %v821 = vpop.permute.xlu0 %820
    %822 = vrot.lane.b32.xlu0 %v705, 127
    %v823 = vpop.permute.xlu0 %822
    %824 = vrot.lane.b32.xlu0 %v748, 127
    %v825 = vpop.permute.xlu0 %824
    %vm826 = vcmask 1039360
    %v827 = vsel %vm826, %v817, %v819
    %v828 = vsel %vm826, %v819, %v821
    %v829 = vsel %vm826, %v821, %v823
    %v830 = vsel %vm826, %v823, %v825
    %840 = vrot.lane.b32.xlu0 %v806, 126
    %v841 = vpop.permute.xlu0 %840
    %842 = vrot.lane.b32.xlu0 %v807, 126
    %v843 = vpop.permute.xlu0 %842
    %844 = vrot.lane.b32.xlu0 %v808, 126
    %v845 = vpop.permute.xlu0 %844
    %846 = vrot.lane.b32.xlu0 %v809, 126
    %v847 = vpop.permute.xlu0 %846
    %848 = vrot.lane.b32.xlu0 %v810, 126
    %v849 = vpop.permute.xlu0 %848
    %vm850 = vcmask 1031168
    %v851 = vsel %vm850, %v841, %v843
    %v852 = vsel %vm850, %v843, %v845
    %v853 = vsel %vm850, %v845, %v847
    %v854 = vsel %vm850, %v847, %v849
    %v859 = vlaneseq
    %v860 = vshrl.u32 %v859, 7
    %v861 = vsub.s32 2, %v860
    %v862 = vrot.slane %v700, %v861
    %v863 = vlaneseq
    %v864 = vshrl.u32 %v863, 7
    %v865 = vsub.s32 6, %v864
    %v866 = vrot.slane %v700, %v865
    %v867 = vlaneseq
    %v868 = vshrl.u32 %v867, 7
    %v869 = vsub.s32 2, %v868
    %v870 = vrot.slane %v701, %v869
    %v871 = vlaneseq
    %v872 = vshrl.u32 %v871, 7
    %v873 = vsub.s32 6, %v872
    %v874 = vrot.slane %v701, %v873
    %v879 = vlaneseq
    %v880 = vshrl.u32 %v879, 7
    %v881 = vsub.s32 2, %v880
    %v882 = vrot.slane %v862, %v881
    %v883 = vlaneseq
    %v884 = vshrl.u32 %v883, 7
    %v885 = vsub.s32 2, %v884
    %v886 = vrot.slane %v866, %v885
    %v887 = vlaneseq
    %v888 = vshrl.u32 %v887, 7
    %v889 = vsub.s32 2, %v888
    %v890 = vrot.slane %v870, %v889
    %v891 = vlaneseq
    %v892 = vshrl.u32 %v891, 7
    %v893 = vsub.s32 2, %v892
    %v894 = vrot.slane %v874, %v893
    %v895 = vmul.f32 %v744, %v882
    %v896 = vmul.f32 %v745, %v886
    %v897 = vmul.f32 %v746, %v890
    %v898 = vmul.f32 %v747, %v894
    %v899 = vmul.f32 %v827, %v882
    %v900 = vmul.f32 %v828, %v886
    %v901 = vmul.f32 %v829, %v890
    %v902 = vmul.f32 %v830, %v894
    %v903 = vmul.f32 %v851, %v882
    %v904 = vmul.f32 %v852, %v886
    %v905 = vmul.f32 %v853, %v890
    %v906 = vmul.f32 %v854, %v894
    %v907 = vld [vmem:[%s7] sm:$0xff]
    %912 = vrot.lane.b32.xlu0 %v731, 16
    %v913 = vpop.permute.xlu0 %912
    %914 = vrot.lane.b32.xlu0 %v735, 16
    %v915 = vpop.permute.xlu0 %914
    %916 = vrot.lane.b32.xlu0 %v739, 16
    %v917 = vpop.permute.xlu0 %916
    %918 = vrot.lane.b32.xlu0 %v743, 16
    %v919 = vpop.permute.xlu0 %918
    %v920 = vsel %vm520, %v913, %v915
    %v921 = vsel %vm520, %v915, %v917
    %v922 = vsel %vm520, %v917, %v919
    %v928 = vmul.f32 %v702, %v913
    %v929 = vmul.f32 %v703, %v920
    %v930 = vmul.f32 %v704, %v921
    %v931 = vmul.f32 %v705, %v922
    %v932 = vmul.f32 %v748, %v919
    %933 = vrot.lane.b32.xlu0 %v772, 18
    %v934 = vpop.permute.xlu0 %933
    %935 = vrot.lane.b32.xlu0 %v776, 18
    %v936 = vpop.permute.xlu0 %935
    %937 = vrot.lane.b32.xlu0 %v780, 18
    %v938 = vpop.permute.xlu0 %937
    %939 = vrot.lane.b32.xlu0 %v784, 18
    %v940 = vpop.permute.xlu0 %939
    %vm941 = vcmask 146432
    %v942 = vsel %vm941, %v934, %v936
    %v943 = vsel %vm941, %v936, %v938
    %v944 = vsel %vm941, %v938, %v940
    %v950 = vmul.f32 %v702, %v934
    %v951 = vmul.f32 %v703, %v942
    %v952 = vmul.f32 %v704, %v943
    %v953 = vmul.f32 %v705, %v944
    %v954 = vmul.f32 %v748, %v940
    %960 = vrot.lane.b32.xlu0 %v950, 126
    %v961 = vpop.permute.xlu0 %960
    %962 = vrot.lane.b32.xlu0 %v951, 126
    %v963 = vpop.permute.xlu0 %962
    %964 = vrot.lane.b32.xlu0 %v952, 126
    %v965 = vpop.permute.xlu0 %964
    %966 = vrot.lane.b32.xlu0 %v953, 126
    %v967 = vpop.permute.xlu0 %966
    %968 = vrot.lane.b32.xlu0 %v954, 126
    %v969 = vpop.permute.xlu0 %968
    %v970 = vsel %vm850, %v961, %v963
    %v971 = vsel %vm850, %v963, %v965
    %v972 = vsel %vm850, %v965, %v967
    %v973 = vsel %vm850, %v967, %v969
    %s974 = scalar_lea.vmem %s7, 8
    %v975 = vld [vmem:[%s974] sm:$0xff]
    %981 = vrot.lane.b32.xlu0 %v928, 112
    %v982 = vpop.permute.xlu0 %981
    %983 = vrot.lane.b32.xlu0 %v929, 112
    %v984 = vpop.permute.xlu0 %983
    %985 = vrot.lane.b32.xlu0 %v930, 112
    %v986 = vpop.permute.xlu0 %985
    %987 = vrot.lane.b32.xlu0 %v931, 112
    %v988 = vpop.permute.xlu0 %987
    %989 = vrot.lane.b32.xlu0 %v932, 112
    %v990 = vpop.permute.xlu0 %989
    %991 = vrot.lane.b32.xlu0 %v827, 112
    %v992 = vpop.permute.xlu0 %991
    %993 = vrot.lane.b32.xlu0 %v828, 112
    %v994 = vpop.permute.xlu0 %993
    %995 = vrot.lane.b32.xlu0 %v829, 112
    %v996 = vpop.permute.xlu0 %995
    %997 = vrot.lane.b32.xlu0 %v830, 112
    %v998 = vpop.permute.xlu0 %997
    %999 = vrot.lane.b32.xlu0 %v825, 112
    %v1000 = vpop.permute.xlu0 %999
    %1001 = vrot.lane.b32.xlu0 %v970, 112
    %v1002 = vpop.permute.xlu0 %1001
    %1003 = vrot.lane.b32.xlu0 %v971, 112
    %v1004 = vpop.permute.xlu0 %1003
    %1005 = vrot.lane.b32.xlu0 %v972, 112
    %v1006 = vpop.permute.xlu0 %1005
    %1007 = vrot.lane.b32.xlu0 %v973, 112
    %v1008 = vpop.permute.xlu0 %1007
    %1009 = vrot.lane.b32.xlu0 %v969, 112
    %v1010 = vpop.permute.xlu0 %1009
    %vm1011 = vcmask 916480
    %v1012 = vsel %vm1011, %v982, %v984
    %v1013 = vsel %vm1011, %v984, %v986
    %v1014 = vsel %vm1011, %v986, %v988
    %v1015 = vsel %vm1011, %v988, %v990
    %v1016 = vsel %vm1011, %v992, %v994
    %v1017 = vsel %vm1011, %v994, %v996
    %v1018 = vsel %vm1011, %v996, %v998
    %v1019 = vsel %vm1011, %v998, %v1000
    %v1020 = vsel %vm1011, %v1002, %v1004
    %v1021 = vsel %vm1011, %v1004, %v1006
    %v1022 = vsel %vm1011, %v1006, %v1008
    %v1023 = vsel %vm1011, %v1008, %v1010
    %vm1036 = vcmask 195584
    %v1038 = vsel %vm1036, %v975, 0
    %1040 = vmatprep.subr.mxu0 %v1013
    %1041 = vmatpush1.msra.mxu0 %v1012
    %1042 = vmatprep.subr.mxu0 %v1017
    %1043 = vmatpush1.msra.mxu0 %v1016
    %1044 = vmatprep.subr.mxu0 %v1021
    %1045 = vmatpush1.msra.mxu0 %v1020
    %1046 = vmatprep.subr.mxu0 0.0
    %1047 = vmatpush1.msra.mxu0 0.0
    %1048 = vmatprep.subr.mxu0 0.0
    %1049 = vmatpush1.msra.mxu0 0.0
    %1050 = vmatprep.subr.mxu0 0.0
    %1051 = vmatpush1.msra.mxu0 0.0
    %1052 = vmatprep.subr.mxu0 0.0
    %1053 = vmatpush1.msra.mxu0 0.0
    %1054 = vmatprep.subr.mxu0 0.0
    %1055 = vmatpush1.msra.mxu0 0.0
    %1056 = vmatprep.subr.mxu0 0.0
    %1057 = vmatpush1.msra.mxu0 0.0
    %1058 = vmatprep.subr.mxu0 0.0
    %1059 = vmatpush1.msra.mxu0 0.0
    %1060 = vmatprep.subr.mxu0 0.0
    %1061 = vmatpush1.msra.mxu0 0.0
    %1062 = vmatprep.subr.mxu0 0.0
    %1063 = vmatpush1.msra.mxu0 0.0
    %1064 = vmatprep.subr.mxu0 0.0
    %1065 = vmatpush1.msra.mxu0 0.0
    %1066 = vmatprep.subr.mxu0 0.0
    %1067 = vmatpush1.msra.mxu0 0.0
    %1068 = vmatprep.subr.mxu0 0.0
    %1069 = vmatpush1.msra.mxu0 0.0
    %1070 = vmatprep.subr.mxu0 0.0
    %1071 = vmatpush1.msra.mxu0 0.0
    %1072 = vmatprep.subr.mxu0 0.0
    %1073 = vmatpush1.msra.mxu0 0.0
    %1074 = vmatprep.subr.mxu0 0.0
    %1075 = vmatpush1.msra.mxu0 0.0
    %1076 = vmatprep.subr.mxu0 0.0
    %1077 = vmatpush1.msra.mxu0 0.0
    %1078 = vmatprep.subr.mxu0 0.0
    %1079 = vmatpush1.msra.mxu0 0.0
    %1080 = vmatprep.subr.mxu0 0.0
    %1081 = vmatpush1.msra.mxu0 0.0
    %1082 = vmatprep.subr.mxu0 0.0
    %1083 = vmatpush1.msra.mxu0 0.0
    %1084 = vmatprep.subr.mxu0 0.0
    %1085 = vmatpush1.msra.mxu0 0.0
    %1086 = vmatprep.subr.mxu0 0.0
    %1087 = vmatpush1.msra.mxu0 0.0
    %1088 = vmatprep.subr.mxu0 0.0
    %1089 = vmatpush1.msra.mxu0 0.0
    %1090 = vmatprep.subr.mxu0 0.0
    %1091 = vmatpush1.msra.mxu0 0.0
    %1092 = vmatprep.subr.mxu0 0.0
    %1093 = vmatpush1.msra.mxu0 0.0
    %1094 = vmatprep.subr.mxu0 0.0
    %1095 = vmatpush1.msra.mxu0 0.0
    %1096 = vmatprep.subr.mxu0 0.0
    %1097 = vmatpush1.msra.mxu0 0.0
    %1098 = vmatprep.subr.mxu0 0.0
    %1099 = vmatpush1.msra.mxu0 0.0
    %1100 = vmatprep.subr.mxu0 0.0
    %1101 = vmatpush1.msra.mxu0 0.0
    %1102 = vmatprep.subr.mxu0 0.0
    %1103 = vmatpush1.msra.mxu0 0.0
    %1104 = vmatprep.mubr.f32.mxu0 0.0
    %1105 = vmatmul.mubr.f32.gmra.mrb[0].mxu0 %v1038
    %v1106 = vpop.f32.mrb[0].mxu0
    %v1107 = vadd.f32 0.0, %v1106
    %v1108 = vpop.f32.mrb[0].mxu0
    %v1109 = vadd.f32 0.0, %v1108
    %1110 = vdwg.mxu0
    %1111 = vmatprep.subr.mxu0 %v1015
    %1112 = vmatpush1.msra.mxu0 %v1014
    %1113 = vmatprep.subr.mxu0 %v1019
    %1114 = vmatpush1.msra.mxu0 %v1018
    %1115 = vmatprep.subr.mxu0 %v1023
    %1116 = vmatpush1.msra.mxu0 %v1022
    %1117 = vmatprep.subr.mxu0 0.0
    %1118 = vmatpush1.msra.mxu0 0.0
    %1119 = vmatprep.subr.mxu0 0.0
    %1120 = vmatpush1.msra.mxu0 0.0
    %1121 = vmatprep.subr.mxu0 0.0
    %1122 = vmatpush1.msra.mxu0 0.0
    %1123 = vmatprep.subr.mxu0 0.0
    %1124 = vmatpush1.msra.mxu0 0.0
    %1125 = vmatprep.subr.mxu0 0.0
    %1126 = vmatpush1.msra.mxu0 0.0
    %1127 = vmatprep.subr.mxu0 0.0
    %1128 = vmatpush1.msra.mxu0 0.0
    %1129 = vmatprep.subr.mxu0 0.0
    %1130 = vmatpush1.msra.mxu0 0.0
    %1131 = vmatprep.subr.mxu0 0.0
    %1132 = vmatpush1.msra.mxu0 0.0
    %1133 = vmatprep.subr.mxu0 0.0
    %1134 = vmatpush1.msra.mxu0 0.0
    %1135 = vmatprep.subr.mxu0 0.0
    %1136 = vmatpush1.msra.mxu0 0.0
    %1137 = vmatprep.subr.mxu0 0.0
    %1138 = vmatpush1.msra.mxu0 0.0
    %1139 = vmatprep.subr.mxu0 0.0
    %1140 = vmatpush1.msra.mxu0 0.0
    %1141 = vmatprep.subr.mxu0 0.0
    %1142 = vmatpush1.msra.mxu0 0.0
    %1143 = vmatprep.subr.mxu0 0.0
    %1144 = vmatpush1.msra.mxu0 0.0
    %1145 = vmatprep.subr.mxu0 0.0
    %1146 = vmatpush1.msra.mxu0 0.0
    %1147 = vmatprep.subr.mxu0 0.0
    %1148 = vmatpush1.msra.mxu0 0.0
    %1149 = vmatprep.subr.mxu0 0.0
    %1150 = vmatpush1.msra.mxu0 0.0
    %1151 = vmatprep.subr.mxu0 0.0
    %1152 = vmatpush1.msra.mxu0 0.0
    %1153 = vmatprep.subr.mxu0 0.0
    %1154 = vmatpush1.msra.mxu0 0.0
    %1155 = vmatprep.subr.mxu0 0.0
    %1156 = vmatpush1.msra.mxu0 0.0
    %1157 = vmatprep.subr.mxu0 0.0
    %1158 = vmatpush1.msra.mxu0 0.0
    %1159 = vmatprep.subr.mxu0 0.0
    %1160 = vmatpush1.msra.mxu0 0.0
    %1161 = vmatprep.subr.mxu0 0.0
    %1162 = vmatpush1.msra.mxu0 0.0
    %1163 = vmatprep.subr.mxu0 0.0
    %1164 = vmatpush1.msra.mxu0 0.0
    %1165 = vmatprep.subr.mxu0 0.0
    %1166 = vmatpush1.msra.mxu0 0.0
    %1167 = vmatprep.subr.mxu0 0.0
    %1168 = vmatpush1.msra.mxu0 0.0
    %1169 = vmatprep.subr.mxu0 0.0
    %1170 = vmatpush1.msra.mxu0 0.0
    %1171 = vmatprep.subr.mxu0 0.0
    %1172 = vmatpush1.msra.mxu0 0.0
    %1173 = vmatprep.subr.mxu0 0.0
    %1174 = vmatpush1.msra.mxu0 0.0
    %1175 = vmatprep.mubr.f32.mxu0 0.0
    %1176 = vmatmul.mubr.f32.gmra.mrb[0].mxu0 %v1038
    %v1177 = vpop.f32.mrb[0].mxu0
    %v1178 = vadd.f32 0.0, %v1177
    %v1179 = vpop.f32.mrb[0].mxu0
    %v1180 = vadd.f32 0.0, %v1179
    %1181 = vdwg.mxu0
    %v1183 = vsel %vm1036, %v907, 0
    %1185 = vmatprep.subr.mxu0 %v896
    %1186 = vmatpush1.msra.mxu0 %v895
    %1187 = vmatprep.subr.mxu0 %v900
    %1188 = vmatpush1.msra.mxu0 %v899
    %1189 = vmatprep.subr.mxu0 %v904
    %1190 = vmatpush1.msra.mxu0 %v903
    %1191 = vmatprep.subr.mxu0 0.0
    %1192 = vmatpush1.msra.mxu0 0.0
    %1193 = vmatprep.subr.mxu0 0.0
    %1194 = vmatpush1.msra.mxu0 0.0
    %1195 = vmatprep.subr.mxu0 0.0
    %1196 = vmatpush1.msra.mxu0 0.0
    %1197 = vmatprep.subr.mxu0 0.0
    %1198 = vmatpush1.msra.mxu0 0.0
    %1199 = vmatprep.subr.mxu0 0.0
    %1200 = vmatpush1.msra.mxu0 0.0
    %1201 = vmatprep.subr.mxu0 0.0
    %1202 = vmatpush1.msra.mxu0 0.0
    %1203 = vmatprep.subr.mxu0 0.0
    %1204 = vmatpush1.msra.mxu0 0.0
    %1205 = vmatprep.subr.mxu0 0.0
    %1206 = vmatpush1.msra.mxu0 0.0
    %1207 = vmatprep.subr.mxu0 0.0
    %1208 = vmatpush1.msra.mxu0 0.0
    %1209 = vmatprep.subr.mxu0 0.0
    %1210 = vmatpush1.msra.mxu0 0.0
    %1211 = vmatprep.subr.mxu0 0.0
    %1212 = vmatpush1.msra.mxu0 0.0
    %1213 = vmatprep.subr.mxu0 0.0
    %1214 = vmatpush1.msra.mxu0 0.0
    %1215 = vmatprep.subr.mxu0 0.0
    %1216 = vmatpush1.msra.mxu0 0.0
    %1217 = vmatprep.subr.mxu0 0.0
    %1218 = vmatpush1.msra.mxu0 0.0
    %1219 = vmatprep.subr.mxu0 0.0
    %1220 = vmatpush1.msra.mxu0 0.0
    %1221 = vmatprep.subr.mxu0 0.0
    %1222 = vmatpush1.msra.mxu0 0.0
    %1223 = vmatprep.subr.mxu0 0.0
    %1224 = vmatpush1.msra.mxu0 0.0
    %1225 = vmatprep.subr.mxu0 0.0
    %1226 = vmatpush1.msra.mxu0 0.0
    %1227 = vmatprep.subr.mxu0 0.0
    %1228 = vmatpush1.msra.mxu0 0.0
    %1229 = vmatprep.subr.mxu0 0.0
    %1230 = vmatpush1.msra.mxu0 0.0
    %1231 = vmatprep.subr.mxu0 0.0
    %1232 = vmatpush1.msra.mxu0 0.0
    %1233 = vmatprep.subr.mxu0 0.0
    %1234 = vmatpush1.msra.mxu0 0.0
    %1235 = vmatprep.subr.mxu0 0.0
    %1236 = vmatpush1.msra.mxu0 0.0
    %1237 = vmatprep.subr.mxu0 0.0
    %1238 = vmatpush1.msra.mxu0 0.0
    %1239 = vmatprep.subr.mxu0 0.0
    %1240 = vmatpush1.msra.mxu0 0.0
    %1241 = vmatprep.subr.mxu0 0.0
    %1242 = vmatpush1.msra.mxu0 0.0
    %1243 = vmatprep.subr.mxu0 0.0
    %1244 = vmatpush1.msra.mxu0 0.0
    %1245 = vmatprep.subr.mxu0 0.0
    %1246 = vmatpush1.msra.mxu0 0.0
    %1247 = vmatprep.subr.mxu0 0.0
    %1248 = vmatpush1.msra.mxu0 0.0
    %1249 = vmatprep.mubr.f32.mxu0 0.0
    %1250 = vmatmul.mubr.f32.gmra.mrb[0].mxu0 %v1183
    %v1251 = vpop.f32.mrb[0].mxu0
    %v1252 = vadd.f32 %v1107, %v1251
    %v1253 = vpop.f32.mrb[0].mxu0
    %v1254 = vadd.f32 %v1109, %v1253
    %1255 = vdwg.mxu0
    %1256 = vmatprep.subr.mxu0 %v898
    %1257 = vmatpush1.msra.mxu0 %v897
    %1258 = vmatprep.subr.mxu0 %v902
    %1259 = vmatpush1.msra.mxu0 %v901
    %1260 = vmatprep.subr.mxu0 %v906
    %1261 = vmatpush1.msra.mxu0 %v905
    %1262 = vmatprep.subr.mxu0 0.0
    %1263 = vmatpush1.msra.mxu0 0.0
    %1264 = vmatprep.subr.mxu0 0.0
    %1265 = vmatpush1.msra.mxu0 0.0
    %1266 = vmatprep.subr.mxu0 0.0
    %1267 = vmatpush1.msra.mxu0 0.0
    %1268 = vmatprep.subr.mxu0 0.0
    %1269 = vmatpush1.msra.mxu0 0.0
    %1270 = vmatprep.subr.mxu0 0.0
    %1271 = vmatpush1.msra.mxu0 0.0
    %1272 = vmatprep.subr.mxu0 0.0
    %1273 = vmatpush1.msra.mxu0 0.0
    %1274 = vmatprep.subr.mxu0 0.0
    %1275 = vmatpush1.msra.mxu0 0.0
    %1276 = vmatprep.subr.mxu0 0.0
    %1277 = vmatpush1.msra.mxu0 0.0
    %1278 = vmatprep.subr.mxu0 0.0
    %1279 = vmatpush1.msra.mxu0 0.0
    %1280 = vmatprep.subr.mxu0 0.0
    %1281 = vmatpush1.msra.mxu0 0.0
    %1282 = vmatprep.subr.mxu0 0.0
    %1283 = vmatpush1.msra.mxu0 0.0
    %1284 = vmatprep.subr.mxu0 0.0
    %1285 = vmatpush1.msra.mxu0 0.0
    %1286 = vmatprep.subr.mxu0 0.0
    %1287 = vmatpush1.msra.mxu0 0.0
    %1288 = vmatprep.subr.mxu0 0.0
    %1289 = vmatpush1.msra.mxu0 0.0
    %1290 = vmatprep.subr.mxu0 0.0
    %1291 = vmatpush1.msra.mxu0 0.0
    %1292 = vmatprep.subr.mxu0 0.0
    %1293 = vmatpush1.msra.mxu0 0.0
    %1294 = vmatprep.subr.mxu0 0.0
    %1295 = vmatpush1.msra.mxu0 0.0
    %1296 = vmatprep.subr.mxu0 0.0
    %1297 = vmatpush1.msra.mxu0 0.0
    %1298 = vmatprep.subr.mxu0 0.0
    %1299 = vmatpush1.msra.mxu0 0.0
    %1300 = vmatprep.subr.mxu0 0.0
    %1301 = vmatpush1.msra.mxu0 0.0
    %1302 = vmatprep.subr.mxu0 0.0
    %1303 = vmatpush1.msra.mxu0 0.0
    %1304 = vmatprep.subr.mxu0 0.0
    %1305 = vmatpush1.msra.mxu0 0.0
    %1306 = vmatprep.subr.mxu0 0.0
    %1307 = vmatpush1.msra.mxu0 0.0
    %1308 = vmatprep.subr.mxu0 0.0
    %1309 = vmatpush1.msra.mxu0 0.0
    %1310 = vmatprep.subr.mxu0 0.0
    %1311 = vmatpush1.msra.mxu0 0.0
    %1312 = vmatprep.subr.mxu0 0.0
    %1313 = vmatpush1.msra.mxu0 0.0
    %1314 = vmatprep.subr.mxu0 0.0
    %1315 = vmatpush1.msra.mxu0 0.0
    %1316 = vmatprep.subr.mxu0 0.0
    %1317 = vmatpush1.msra.mxu0 0.0
    %1318 = vmatprep.subr.mxu0 0.0
    %1319 = vmatpush1.msra.mxu0 0.0
    %1320 = vmatprep.mubr.f32.mxu0 0.0
    %1321 = vmatmul.mubr.f32.gmra.mrb[0].mxu0 %v1183
    %v1322 = vpop.f32.mrb[0].mxu0
    %v1323 = vadd.f32 %v1178, %v1322
    %v1324 = vpop.f32.mrb[0].mxu0
    %v1325 = vadd.f32 %v1180, %v1324
    %1326 = vdwg.mxu0
    %1327 = vrot.lane.b32.xlu0 %v731, 32
    %v1328 = vpop.permute.xlu0 %1327
    %1329 = vrot.lane.b32.xlu0 %v735, 32
    %v1330 = vpop.permute.xlu0 %1329
    %1331 = vrot.lane.b32.xlu0 %v739, 32
    %v1332 = vpop.permute.xlu0 %1331
    %1333 = vrot.lane.b32.xlu0 %v743, 32
    %v1334 = vpop.permute.xlu0 %1333
    %v1335 = vsel %vm344, %v1328, %v1330
    %v1336 = vsel %vm344, %v1330, %v1332
    %v1337 = vsel %vm344, %v1332, %v1334
    %v1343 = vmul.f32 %v702, %v1328
    %v1344 = vmul.f32 %v703, %v1335
    %v1345 = vmul.f32 %v704, %v1336
    %v1346 = vmul.f32 %v705, %v1337
    %v1347 = vmul.f32 %v748, %v1334
    %1348 = vrot.lane.b32.xlu0 %v772, 34
    %v1349 = vpop.permute.xlu0 %1348
    %1350 = vrot.lane.b32.xlu0 %v776, 34
    %v1351 = vpop.permute.xlu0 %1350
    %1352 = vrot.lane.b32.xlu0 %v780, 34
    %v1353 = vpop.permute.xlu0 %1352
    %1354 = vrot.lane.b32.xlu0 %v784, 34
    %v1355 = vpop.permute.xlu0 %1354
    %vm1356 = vcmask 277504
    %v1357 = vsel %vm1356, %v1349, %v1351
    %v1358 = vsel %vm1356, %v1351, %v1353
    %v1359 = vsel %vm1356, %v1353, %v1355
    %v1365 = vmul.f32 %v702, %v1349
    %v1366 = vmul.f32 %v703, %v1357
    %v1367 = vmul.f32 %v704, %v1358
    %v1368 = vmul.f32 %v705, %v1359
    %v1369 = vmul.f32 %v748, %v1355
    %1376 = vrot.lane.b32.xlu0 %v1365, 126
    %v1377 = vpop.permute.xlu0 %1376
    %1378 = vrot.lane.b32.xlu0 %v1366, 126
    %v1379 = vpop.permute.xlu0 %1378
    %1380 = vrot.lane.b32.xlu0 %v1367, 126
    %v1381 = vpop.permute.xlu0 %1380
    %1382 = vrot.lane.b32.xlu0 %v1368, 126
    %v1383 = vpop.permute.xlu0 %1382
    %1384 = vrot.lane.b32.xlu0 %v1369, 126
    %v1385 = vpop.permute.xlu0 %1384
    %v1386 = vsel %vm850, %v1377, %v1379
    %v1387 = vsel %vm850, %v1379, %v1381
    %v1388 = vsel %vm850, %v1381, %v1383
    %v1389 = vsel %vm850, %v1383, %v1385
    %v1395 = vlaneseq
    %v1396 = vshrl.u32 %v1395, 7
    %v1397 = vsub.s32 3, %v1396
    %v1398 = vrot.slane %v700, %v1397
    %v1399 = vlaneseq
    %v1400 = vshrl.u32 %v1399, 7
    %v1401 = vsub.s32 7, %v1400
    %v1402 = vrot.slane %v700, %v1401
    %v1403 = vlaneseq
    %v1404 = vshrl.u32 %v1403, 7
    %v1405 = vsub.s32 3, %v1404
    %v1406 = vrot.slane %v701, %v1405
    %v1407 = vlaneseq
    %v1408 = vshrl.u32 %v1407, 7
    %v1409 = vsub.s32 7, %v1408
    %v1410 = vrot.slane %v701, %v1409
    %v1415 = vlaneseq
    %v1416 = vshrl.u32 %v1415, 7
    %v1417 = vsub.s32 3, %v1416
    %v1418 = vrot.slane %v1398, %v1417
    %v1419 = vlaneseq
    %v1420 = vshrl.u32 %v1419, 7
    %v1421 = vsub.s32 3, %v1420
    %v1422 = vrot.slane %v1402, %v1421
    %v1423 = vlaneseq
    %v1424 = vshrl.u32 %v1423, 7
    %v1425 = vsub.s32 3, %v1424
    %v1426 = vrot.slane %v1406, %v1425
    %v1427 = vlaneseq
    %v1428 = vshrl.u32 %v1427, 7
    %v1429 = vsub.s32 3, %v1428
    %v1430 = vrot.slane %v1410, %v1429
    %1435 = vrot.lane.b32.xlu0 %v1418, 32
    %v1436 = vpop.permute.xlu0 %1435
    %1437 = vrot.lane.b32.xlu0 %v1422, 32
    %v1438 = vpop.permute.xlu0 %1437
    %1439 = vrot.lane.b32.xlu0 %v1426, 32
    %v1440 = vpop.permute.xlu0 %1439
    %1441 = vrot.lane.b32.xlu0 %v1430, 32
    %v1442 = vpop.permute.xlu0 %1441
    %v1443 = vsel %vm344, %v1436, %v1438
    %v1444 = vsel %vm344, %v1438, %v1440
    %v1445 = vsel %vm344, %v1440, %v1442
    %v1451 = vmul.f32 %v1343, %v1436
    %v1452 = vmul.f32 %v1344, %v1443
    %v1453 = vmul.f32 %v1345, %v1444
    %v1454 = vmul.f32 %v1346, %v1445
    %v1455 = vmul.f32 %v1347, %v1442
    %v1456 = vmul.f32 %v827, %v1436
    %v1457 = vmul.f32 %v828, %v1443
    %v1458 = vmul.f32 %v829, %v1444
    %v1459 = vmul.f32 %v830, %v1445
    %v1460 = vmul.f32 %v825, %v1442
    %v1461 = vmul.f32 %v1386, %v1436
    %v1462 = vmul.f32 %v1387, %v1443
    %v1463 = vmul.f32 %v1388, %v1444
    %v1464 = vmul.f32 %v1389, %v1445
    %v1465 = vmul.f32 %v1385, %v1442
    %s1466 = scalar_lea.vmem %s7, 16
    %v1467 = vld [vmem:[%s1466] sm:$0xff]
    %1483 = vrot.lane.b32.xlu0 %v1451, 96
    %v1484 = vpop.permute.xlu0 %1483
    %1485 = vrot.lane.b32.xlu0 %v1452, 96
    %v1486 = vpop.permute.xlu0 %1485
    %1487 = vrot.lane.b32.xlu0 %v1453, 96
    %v1488 = vpop.permute.xlu0 %1487
    %1489 = vrot.lane.b32.xlu0 %v1454, 96
    %v1490 = vpop.permute.xlu0 %1489
    %1491 = vrot.lane.b32.xlu0 %v1455, 96
    %v1492 = vpop.permute.xlu0 %1491
    %1493 = vrot.lane.b32.xlu0 %v1456, 96
    %v1494 = vpop.permute.xlu0 %1493
    %1495 = vrot.lane.b32.xlu0 %v1457, 96
    %v1496 = vpop.permute.xlu0 %1495
    %1497 = vrot.lane.b32.xlu0 %v1458, 96
    %v1498 = vpop.permute.xlu0 %1497
    %1499 = vrot.lane.b32.xlu0 %v1459, 96
    %v1500 = vpop.permute.xlu0 %1499
    %1501 = vrot.lane.b32.xlu0 %v1460, 96
    %v1502 = vpop.permute.xlu0 %1501
    %1503 = vrot.lane.b32.xlu0 %v1461, 96
    %v1504 = vpop.permute.xlu0 %1503
    %1505 = vrot.lane.b32.xlu0 %v1462, 96
    %v1506 = vpop.permute.xlu0 %1505
    %1507 = vrot.lane.b32.xlu0 %v1463, 96
    %v1508 = vpop.permute.xlu0 %1507
    %1509 = vrot.lane.b32.xlu0 %v1464, 96
    %v1510 = vpop.permute.xlu0 %1509
    %1511 = vrot.lane.b32.xlu0 %v1465, 96
    %v1512 = vpop.permute.xlu0 %1511
    %vm1513 = vcmask 785408
    %v1514 = vsel %vm1513, %v1484, %v1486
    %v1515 = vsel %vm1513, %v1486, %v1488
    %v1516 = vsel %vm1513, %v1488, %v1490
    %v1517 = vsel %vm1513, %v1490, %v1492
    %v1518 = vsel %vm1513, %v1494, %v1496
    %v1519 = vsel %vm1513, %v1496, %v1498
    %v1520 = vsel %vm1513, %v1498, %v1500
    %v1521 = vsel %vm1513, %v1500, %v1502
    %v1522 = vsel %vm1513, %v1504, %v1506
    %v1523 = vsel %vm1513, %v1506, %v1508
    %v1524 = vsel %vm1513, %v1508, %v1510
    %v1525 = vsel %vm1513, %v1510, %v1512
    %v1539 = vsel %vm1036, %v1467, 0
    %1541 = vmatprep.subr.mxu0 %v1515
    %1542 = vmatpush1.msra.mxu0 %v1514
    %1543 = vmatprep.subr.mxu0 %v1519
    %1544 = vmatpush1.msra.mxu0 %v1518
    %1545 = vmatprep.subr.mxu0 %v1523
    %1546 = vmatpush1.msra.mxu0 %v1522
    %1547 = vmatprep.subr.mxu0 0.0
    %1548 = vmatpush1.msra.mxu0 0.0
    %1549 = vmatprep.subr.mxu0 0.0
    %1550 = vmatpush1.msra.mxu0 0.0
    %1551 = vmatprep.subr.mxu0 0.0
    %1552 = vmatpush1.msra.mxu0 0.0
    %1553 = vmatprep.subr.mxu0 0.0
    %1554 = vmatpush1.msra.mxu0 0.0
    %1555 = vmatprep.subr.mxu0 0.0
    %1556 = vmatpush1.msra.mxu0 0.0
    %1557 = vmatprep.subr.mxu0 0.0
    %1558 = vmatpush1.msra.mxu0 0.0
    %1559 = vmatprep.subr.mxu0 0.0
    %1560 = vmatpush1.msra.mxu0 0.0
    %1561 = vmatprep.subr.mxu0 0.0
    %1562 = vmatpush1.msra.mxu0 0.0
    %1563 = vmatprep.subr.mxu0 0.0
    %1564 = vmatpush1.msra.mxu0 0.0
    %1565 = vmatprep.subr.mxu0 0.0
    %1566 = vmatpush1.msra.mxu0 0.0
    %1567 = vmatprep.subr.mxu0 0.0
    %1568 = vmatpush1.msra.mxu0 0.0
    %1569 = vmatprep.subr.mxu0 0.0
    %1570 = vmatpush1.msra.mxu0 0.0
    %1571 = vmatprep.subr.mxu0 0.0
    %1572 = vmatpush1.msra.mxu0 0.0
    %1573 = vmatprep.subr.mxu0 0.0
    %1574 = vmatpush1.msra.mxu0 0.0
    %1575 = vmatprep.subr.mxu0 0.0
    %1576 = vmatpush1.msra.mxu0 0.0
    %1577 = vmatprep.subr.mxu0 0.0
    %1578 = vmatpush1.msra.mxu0 0.0
    %1579 = vmatprep.subr.mxu0 0.0
    %1580 = vmatpush1.msra.mxu0 0.0
    %1581 = vmatprep.subr.mxu0 0.0
    %1582 = vmatpush1.msra.mxu0 0.0
    %1583 = vmatprep.subr.mxu0 0.0
    %1584 = vmatpush1.msra.mxu0 0.0
    %1585 = vmatprep.subr.mxu0 0.0
    %1586 = vmatpush1.msra.mxu0 0.0
    %1587 = vmatprep.subr.mxu0 0.0
    %1588 = vmatpush1.msra.mxu0 0.0
    %1589 = vmatprep.subr.mxu0 0.0
    %1590 = vmatpush1.msra.mxu0 0.0
    %1591 = vmatprep.subr.mxu0 0.0
    %1592 = vmatpush1.msra.mxu0 0.0
    %1593 = vmatprep.subr.mxu0 0.0
    %1594 = vmatpush1.msra.mxu0 0.0
    %1595 = vmatprep.subr.mxu0 0.0
    %1596 = vmatpush1.msra.mxu0 0.0
    %1597 = vmatprep.subr.mxu0 0.0
    %1598 = vmatpush1.msra.mxu0 0.0
    %1599 = vmatprep.subr.mxu0 0.0
    %1600 = vmatpush1.msra.mxu0 0.0
    %1601 = vmatprep.subr.mxu0 0.0
    %1602 = vmatpush1.msra.mxu0 0.0
    %1603 = vmatprep.subr.mxu0 0.0
    %1604 = vmatpush1.msra.mxu0 0.0
    %1605 = vmatprep.mubr.f32.mxu0 0.0
    %1606 = vmatmul.mubr.f32.gmra.mrb[0].mxu0 %v1539
    %v1607 = vpop.f32.mrb[0].mxu0
    %v1608 = vadd.f32 0.0, %v1607
    %v1609 = vpop.f32.mrb[0].mxu0
    %v1610 = vadd.f32 0.0, %v1609
    %1611 = vdwg.mxu0
    %1612 = vmatprep.subr.mxu0 %v1517
    %1613 = vmatpush1.msra.mxu0 %v1516
    %1614 = vmatprep.subr.mxu0 %v1521
    %1615 = vmatpush1.msra.mxu0 %v1520
    %1616 = vmatprep.subr.mxu0 %v1525
    %1617 = vmatpush1.msra.mxu0 %v1524
    %1618 = vmatprep.subr.mxu0 0.0
    %1619 = vmatpush1.msra.mxu0 0.0
    %1620 = vmatprep.subr.mxu0 0.0
    %1621 = vmatpush1.msra.mxu0 0.0
    %1622 = vmatprep.subr.mxu0 0.0
    %1623 = vmatpush1.msra.mxu0 0.0
    %1624 = vmatprep.subr.mxu0 0.0
    %1625 = vmatpush1.msra.mxu0 0.0
    %1626 = vmatprep.subr.mxu0 0.0
    %1627 = vmatpush1.msra.mxu0 0.0
    %1628 = vmatprep.subr.mxu0 0.0
    %1629 = vmatpush1.msra.mxu0 0.0
    %1630 = vmatprep.subr.mxu0 0.0
    %1631 = vmatpush1.msra.mxu0 0.0
    %1632 = vmatprep.subr.mxu0 0.0
    %1633 = vmatpush1.msra.mxu0 0.0
    %1634 = vmatprep.subr.mxu0 0.0
    %1635 = vmatpush1.msra.mxu0 0.0
    %1636 = vmatprep.subr.mxu0 0.0
    %1637 = vmatpush1.msra.mxu0 0.0
    %1638 = vmatprep.subr.mxu0 0.0
    %1639 = vmatpush1.msra.mxu0 0.0
    %1640 = vmatprep.subr.mxu0 0.0
    %1641 = vmatpush1.msra.mxu0 0.0
    %1642 = vmatprep.subr.mxu0 0.0
    %1643 = vmatpush1.msra.mxu0 0.0
    %1644 = vmatprep.subr.mxu0 0.0
    %1645 = vmatpush1.msra.mxu0 0.0
    %1646 = vmatprep.subr.mxu0 0.0
    %1647 = vmatpush1.msra.mxu0 0.0
    %1648 = vmatprep.subr.mxu0 0.0
    %1649 = vmatpush1.msra.mxu0 0.0
    %1650 = vmatprep.subr.mxu0 0.0
    %1651 = vmatpush1.msra.mxu0 0.0
    %1652 = vmatprep.subr.mxu0 0.0
    %1653 = vmatpush1.msra.mxu0 0.0
    %1654 = vmatprep.subr.mxu0 0.0
    %1655 = vmatpush1.msra.mxu0 0.0
    %1656 = vmatprep.subr.mxu0 0.0
    %1657 = vmatpush1.msra.mxu0 0.0
    %1658 = vmatprep.subr.mxu0 0.0
    %1659 = vmatpush1.msra.mxu0 0.0
    %1660 = vmatprep.subr.mxu0 0.0
    %1661 = vmatpush1.msra.mxu0 0.0
    %1662 = vmatprep.subr.mxu0 0.0
    %1663 = vmatpush1.msra.mxu0 0.0
    %1664 = vmatprep.subr.mxu0 0.0
    %1665 = vmatpush1.msra.mxu0 0.0
    %1666 = vmatprep.subr.mxu0 0.0
    %1667 = vmatpush1.msra.mxu0 0.0
    %1668 = vmatprep.subr.mxu0 0.0
    %1669 = vmatpush1.msra.mxu0 0.0
    %1670 = vmatprep.subr.mxu0 0.0
    %1671 = vmatpush1.msra.mxu0 0.0
    %1672 = vmatprep.subr.mxu0 0.0
    %1673 = vmatpush1.msra.mxu0 0.0
    %1674 = vmatprep.subr.mxu0 0.0
    %1675 = vmatpush1.msra.mxu0 0.0
    %1676 = vmatprep.mubr.f32.mxu0 0.0
    %1677 = vmatmul.mubr.f32.gmra.mrb[0].mxu0 %v1539
    %v1678 = vpop.f32.mrb[0].mxu0
    %v1679 = vadd.f32 0.0, %v1678
    %v1680 = vpop.f32.mrb[0].mxu0
    %v1681 = vadd.f32 0.0, %v1680
    %1682 = vdwg.mxu0
    %v1683 = vadd.f32 %v1252, %v1608
    %v1684 = vadd.f32 %v1254, %v1610
    %v1685 = vadd.f32 %v1323, %v1679
    %v1686 = vadd.f32 %v1325, %v1681
    %v1687 = vld [vmem:[%s8] sm:$0xff]
    %1689 = vset.pattern.permute.xlu0 0
    %1690 = vperm.xlu0 %1689, %v1687
    %v1691 = vpop.permute.xlu0 %1690
    %v1693 = vadd.f32 %v1683, %v1691
    %v1694 = vadd.f32 %v1684, %v1691
    %v1695 = vadd.f32 %v1685, %v1691
    %v1696 = vadd.f32 %v1686, %v1691
    %v1697 = vmax.f32 %v1693, 0.0
    %v1698 = vmax.f32 %v1694, 0.0
    %v1699 = vmax.f32 %v1695, 0.0
    %v1700 = vmax.f32 %v1696, 0.0
    %1701 = vst [vmem:[#allocation8] sm:$0xff] %v1697
    %1702 = vst [vmem:[#allocation8 + $0x8] sm:$0xff] %v1698
    %s1703 = scalar_lea.vmem [#allocation8], 16
    %1704 = vst [vmem:[%s1703] sm:$0xff] %v1699
    %1705 = vst [vmem:[%s1703 + $0x8] sm:$0xff] %v1700
    // Predicated region
    $region50: #{tpu_custom_call.1} parent=1 // pred_check
      _
    $region51: #{tpu_custom_call.1} parent=1 // pred_check_branch
      %1707 = sbr.rel (0) target = $region53
    $region52: #{tpu_custom_call.1} parent=1 // pred_region
      %s1709 = ssub.s32 512, 512
      %1710 = vsyncadd [#allocation5], %s1709
      %s1711 = sshll.u32 [#allocation8], 4
      %s1712 = int_to_ptr.vmem [resolvable:$true] %s1711
      %1717 = dma.vmem_to_hbm [thread:$0]  %s1712, 512, %s10, [#allocation5], 256, 256, 16
    $region53: #{tpu_custom_call.1} parent=1 // pred_fallthru
      _
    // Predicated region
    $region54: #{tpu_custom_call.1} parent=1 // pred_check
      _
    $region55: #{tpu_custom_call.1} parent=1 // pred_check_branch
      %1719 = sbr.rel (0) target = $region57
    $region56: #{tpu_custom_call.1} parent=1 // pred_region
      %1720 = dma.done [#allocation5], 512
    $region57: #{tpu_custom_call.1} parent=1 // pred_fallthru
      _
    %1721 = vsyncpa [#allocation4], 1
    %1722 = vsyncpa [#allocation7], 1
    %1723 = vsyncpa [#allocation5], 1

</llo_original>
